<compile_context>
chip_gen: v7x
topology: tpu7x:2x2x1
jax: 0.10.0
libtpu: 0.0.40
codegen_flags: <defaults>
</compile_context>

<pallas_src>
import functools

import jax
import jax.numpy as jnp
from jax.experimental import pallas as pl
from jax.experimental.pallas import tpu as pltpu


NEG_SLOPE = 0.01  # F.leaky_relu default


def _leaky(v):
    return jnp.where(v >= 0, v, NEG_SLOPE * v)


def _round_up(v, m):
    return (v + m - 1) // m * m


def mylayer_kernel(x_ref, col_ref, row_ref, we_ref,
                   w1_ref, b1_ref, w3_ref, b3_ref, w7_ref, b7_ref,
                   o_ref, *, n_real):
    x = x_ref[...]                       # [Np, 20] f32 (padded node rows are 0)
    col = col_ref[...]                   # [1, Ep] int32 (-1 on padded edges)
    row = row_ref[...]                   # [1, Ep] int32 (-1 on padded edges)
    we = we_ref[...]                     # [1, Ep] f32   ( 0 on padded edges)

    w1t = w1_ref[...]; b1 = b1_ref[...]  # [20, 32], [1, 32]
    w3t = w3_ref[...]; b3 = b3_ref[...]  # [32, 64], [1, 64]
    w7t = w7_ref[...]; b7 = b7_ref[...]  # [64, 2],  [1, 2]

    np_, ep = x.shape[0], col.shape[1]

    # ---- single [Np, Ep]-oriented one-hot family (edge index on lanes) ------
    node_ids = jax.lax.broadcasted_iota(jnp.int32, (np_, ep), 0)        # [Np, Ep]
    # gather operator (transposed) with the edge weight folded in:
    #   gat_t[n, e] = we[e] if n == col[e] else 0       (bf16: 0 / we entries)
    gat_t = jnp.where(node_ids == col, we, 0.0).astype(jnp.bfloat16)
    # scatter-sum operator: sca[n, e] = 1 if n == row[e] else 0 (exact in bf16)
    sca = jnp.where(node_ids == row, 1.0, 0.0).astype(jnp.bfloat16)

    # Degree counts via the MXU (off the XLU); padded edges never match.
    ones_e = jnp.ones((ep, 1), jnp.bfloat16)
    cnt = jnp.dot(sca, ones_e, preferred_element_type=jnp.float32)      # [Np, 1]
    inv_cnt = pl.reciprocal(jnp.maximum(cnt, 1.0), approx=True)         # EUP slot

    dn_gather = (((0,), (0,)), ((), ()))  # contract node dim of gat_t and z

    def layer(h, wt, b):
        # One node-level matmul feeds both the self path and the edge path:
        #   linear(h[col] * we) == we * (h @ W.T)[col] + b == gat_t.T @ z + b
        z = jnp.dot(h, wt, preferred_element_type=jnp.float32)          # [Np, F]
        self_p = _leaky(z + b)
        ez = jax.lax.dot_general(gat_t, z.astype(jnp.bfloat16),
                                 dimension_numbers=dn_gather,
                                 preferred_element_type=jnp.float32)    # [Ep, F]
        e = _leaky(ez + b)
        agg = jnp.dot(sca, e.astype(jnp.bfloat16),
                      preferred_element_type=jnp.float32) * inv_cnt     # scatter_mean
        return agg + self_p                                             # dropout = id

    out1 = layer(x, w1t, b1)       # [Np, 32]
    out2 = layer(out1, w3t, b3)    # [Np, 64]

    # ---- global mean pool over REAL nodes only (padded rows carry leaky(b)) -
    pool_w = (jax.lax.broadcasted_iota(jnp.int32, (1, np_), 1) < n_real
              ).astype(jnp.float32) * (1.0 / float(n_real))             # [1, Np]
    pooled = jnp.dot(pool_w, out2, preferred_element_type=jnp.float32)  # [1, 64]

    logits = jnp.dot(pooled, w7t, preferred_element_type=jnp.float32) + b7
    m = jnp.max(logits, axis=-1, keepdims=True)
    lse = jnp.log(jnp.sum(jnp.exp(logits - m), axis=-1, keepdims=True)) + m
    o_ref[...] = logits - lse


def _full_spec(shape):
    ndim = len(shape)
    return pl.BlockSpec(shape, lambda i, _n=ndim: (0,) * _n)


def _vmem_limit_bytes():
    # ~48 MiB on v7x (64 MiB physical), ~96 MiB on v5e/v6e (128 MiB physical).
    cap = 128 * 1024 * 1024
    try:
        info = pltpu.get_tpu_info()
        cap = int(getattr(info, "vmem_capacity_bytes", cap) or cap)
    except Exception:
        pass
    return min(100 * 1024 * 1024, int(cap * 3 // 4))


def mylayer_forward(x, edge, weight, params):
    """x: [N, 20] f32, edge: [2, E] int32 (row, col), weight: [E] f32."""
    N, Fin = x.shape
    E = edge.shape[1]
    if N == 0 or E == 0:
        raise ValueError("empty graphs (N == 0 or E == 0) are not supported")

    # Pad to full (8,128) tiles; padded edges (index -1, weight 0) never match
    # any node, padded nodes are masked out of the pool -> numerically exact.
    Np = _round_up(N, 128)
    Ep = _round_up(E, 128)

    x_p = jnp.zeros((Np, Fin), jnp.float32).at[:N].set(x.astype(jnp.float32))
    col = jnp.full((1, Ep), -1, jnp.int32).at[0, :E].set(edge[1].astype(jnp.int32))
    row = jnp.full((1, Ep), -1, jnp.int32).at[0, :E].set(edge[0].astype(jnp.int32))
    we = jnp.zeros((1, Ep), jnp.float32).at[0, :E].set(weight.astype(jnp.float32))

    args = (x_p, col, row, we,
            params["w1t"], params["b1"],
            params["w3t"], params["b3"],
            params["w7t"], params["b7"])

    F1 = params["w1t"].shape[1]
    F2 = params["w3t"].shape[1]
    C = params["w7t"].shape[1]

    flops = int(
        2 * (Np * Fin * F1 + Np * F1 * F2 + F2 * C)   # node-level matmuls
        + 4 * Np * Ep * (F1 + F2)                     # gather + scatter, 2 layers
        + 2 * Np * Ep                                 # degree-count matmul
        + 2 * Np * F2                                 # mean-pool matmul
        + 6 * Np * Ep)                                # one-hot build (VPU)
    bytes_accessed = int(4 * (Np * Fin + 3 * Ep + Fin * F1 + F1
                              + F1 * F2 + F2 + F2 * C + 2 * C))

    kernel = functools.partial(mylayer_kernel, n_real=N)

    return pl.pallas_call(
        kernel,
        out_shape=jax.ShapeDtypeStruct((1, C), jnp.float32),
        grid=(1,),
        in_specs=[_full_spec(a.shape) for a in args],
        out_specs=_full_spec((1, C)),
        compiler_params=pltpu.CompilerParams(
            dimension_semantics=("arbitrary",),
            vmem_limit_bytes=_vmem_limit_bytes()),
        cost_estimate=pl.CostEstimate(
            flops=flops, transcendentals=4, bytes_accessed=bytes_accessed),
    )(*args)


def init_params(key):
    # nn.init.zeros_ on all weight matrices (per the PyTorch reference); biases
    # use the PyTorch Linear default uniform(-1/sqrt(fan_in), 1/sqrt(fan_in)).
    k1, k3, k7 = jax.random.split(key, 3)
    b1_bound = 1.0 / jnp.sqrt(20.0)
    b3_bound = 1.0 / jnp.sqrt(32.0)
    b7_bound = 1.0 / jnp.sqrt(64.0)
    return {
        "w1t": jnp.zeros((20, 32), jnp.float32),   # linear1.weight.T (zero-init)
        "b1": jax.random.uniform(k1, (1, 32), jnp.float32, -b1_bound, b1_bound),
        "w3t": jnp.zeros((32, 64), jnp.float32),   # linear3.weight.T (zero-init)
        "b3": jax.random.uniform(k3, (1, 64), jnp.float32, -b3_bound, b3_bound),
        "w7t": jnp.zeros((64, 2), jnp.float32),    # linear7.weight.T (zero-init)
        "b7": jax.random.uniform(k7, (1, 2), jnp.float32, -b7_bound, b7_bound),
    }


def ref_forward(x, edge, weight, params):
    """Pure-JAX reference of the PyTorch module (eval-mode dropout)."""
    N = x.shape[0]
    row, col = edge[0], edge[1]

    def scatter_mean(vals, idx, n):
        s = jax.ops.segment_sum(vals, idx, num_segments=n)
        c = jax.ops.segment_sum(jnp.ones((vals.shape[0], 1), vals.dtype), idx,
                                num_segments=n)
        return s / jnp.maximum(c, 1.0)

    h = x[col] * weight[:, None]
    h = _leaky(h @ params["w1t"] + params["b1"])
    h = scatter_mean(h, row, N)
    out1 = h + _leaky(x @ params["w1t"] + params["b1"])

    h = out1[col] * weight[:, None]
    h = _leaky(h @ params["w3t"] + params["b3"])
    h = scatter_mean(h, row, N)
    out2 = h + _leaky(out1 @ params["w3t"] + params["b3"])

    pooled = jnp.mean(out2, axis=0, keepdims=True)
    logits = pooled @ params["w7t"] + params["b7"]
    return jax.nn.log_softmax(logits, axis=1)


if __name__ == "__main__":
    key = jax.random.PRNGKey(0)
    kx, kw, ke, kp = jax.random.split(key, 4)

    N, E = 8, 16
    x = jax.random.normal(kx, (N, 20), jnp.float32)
    weight = jax.random.uniform(kw, (E,), jnp.float32, 0.1, 1.0)
    row = jax.random.randint(ke, (E,), 0, N, jnp.int32)
    col = jax.random.randint(jax.random.fold_in(ke, 1), (E,), 0, N, jnp.int32)
    edge = jnp.stack([row, col], axis=0)           # [2, E]

    # 1) Spec-faithful parameters (zero-init weights, as in the PyTorch module).
    params = init_params(kp)
    out = jax.block_until_ready(mylayer_forward(x, edge, weight, params))
    assert out.shape == (1, 2)
    assert bool(jnp.all(jnp.isfinite(out)))

    # 2) Random-weight validation against a pure-JAX reference (zero weights
    #    would hide gather/scatter bugs).  Tolerance absorbs the deliberate
    #    bf16 rounding of z / we inside the operator matmuls.
    kr1, kr3, kr7 = jax.random.split(jax.random.PRNGKey(1), 3)
    params_rand = dict(params)
    params_rand["w1t"] = 0.2 * jax.random.normal(kr1, (20, 32), jnp.float32)
    params_rand["w3t"] = 0.2 * jax.random.normal(kr3, (32, 64), jnp.float32)
    params_rand["w7t"] = 0.2 * jax.random.normal(kr7, (64, 2), jnp.float32)

    got = jax.block_until_ready(mylayer_forward(x, edge, weight, params_rand))
    want = jax.block_until_ready(ref_forward(x, edge, weight, params_rand))
    assert got.shape == want.shape == (1, 2)
    assert bool(jnp.allclose(got, want, rtol=5e-2, atol=5e-2)), (got, want)

    print("KERNEL_OK")
</pallas_src>

<mosaic_0001>
module attributes {stable_mosaic.version = 11 : i64} {
  func.func @mylayer_kernel(%arg0: i32, %arg1: memref<128x20xf32, #tpu.memory_space<vmem>>, %arg2: memref<1x128xi32, #tpu.memory_space<vmem>>, %arg3: memref<1x128xi32, #tpu.memory_space<vmem>>, %arg4: memref<1x128xf32, #tpu.memory_space<vmem>>, %arg5: memref<20x32xf32, #tpu.memory_space<vmem>>, %arg6: memref<1x32xf32, #tpu.memory_space<vmem>>, %arg7: memref<32x64xf32, #tpu.memory_space<vmem>>, %arg8: memref<1x64xf32, #tpu.memory_space<vmem>>, %arg9: memref<64x2xf32, #tpu.memory_space<vmem>>, %arg10: memref<1x2xf32, #tpu.memory_space<vmem>>, %arg11: memref<1x2xf32, #tpu.memory_space<vmem>>) attributes {dimension_semantics = [#tpu.dimension_semantics<arbitrary>], iteration_bounds = array<i64: 1>, scalar_prefetch = 0 : i64, scratch_operands = 0 : i64, tpu.core_type = #tpu.core_type<tc>, window_params = [{pipeline_mode = #tpu.pipeline_mode<synchronous>, transform_indices = @transform_0, window_bounds = array<i64: 128, 20>}, {pipeline_mode = #tpu.pipeline_mode<synchronous>, transform_indices = @transform_1, window_bounds = array<i64: 1, 128>}, {pipeline_mode = #tpu.pipeline_mode<synchronous>, transform_indices = @transform_2, window_bounds = array<i64: 1, 128>}, {pipeline_mode = #tpu.pipeline_mode<synchronous>, transform_indices = @transform_3, window_bounds = array<i64: 1, 128>}, {pipeline_mode = #tpu.pipeline_mode<synchronous>, transform_indices = @transform_4, window_bounds = array<i64: 20, 32>}, {pipeline_mode = #tpu.pipeline_mode<synchronous>, transform_indices = @transform_5, window_bounds = array<i64: 1, 32>}, {pipeline_mode = #tpu.pipeline_mode<synchronous>, transform_indices = @transform_6, window_bounds = array<i64: 32, 64>}, {pipeline_mode = #tpu.pipeline_mode<synchronous>, transform_indices = @transform_7, window_bounds = array<i64: 1, 64>}, {pipeline_mode = #tpu.pipeline_mode<synchronous>, transform_indices = @transform_8, window_bounds = array<i64: 64, 2>}, {pipeline_mode = #tpu.pipeline_mode<synchronous>, transform_indices = @transform_9, window_bounds = array<i64: 1, 2>}, {pipeline_mode = #tpu.pipeline_mode<synchronous>, transform_indices = @transform_10, window_bounds = array<i64: 1, 2>}]} {
    %c0 = arith.constant 0 : index
    %c0_0 = arith.constant 0 : index
    %0 = vector.load %arg1[%c0, %c0_0] : memref<128x20xf32, #tpu.memory_space<vmem>>, vector<128x20xf32>
    %c0_1 = arith.constant 0 : index
    %c0_2 = arith.constant 0 : index
    %1 = vector.load %arg2[%c0_1, %c0_2] : memref<1x128xi32, #tpu.memory_space<vmem>>, vector<1x128xi32>
    %c0_3 = arith.constant 0 : index
    %c0_4 = arith.constant 0 : index
    %2 = vector.load %arg3[%c0_3, %c0_4] : memref<1x128xi32, #tpu.memory_space<vmem>>, vector<1x128xi32>
    %c0_5 = arith.constant 0 : index
    %c0_6 = arith.constant 0 : index
    %3 = vector.load %arg4[%c0_5, %c0_6] : memref<1x128xf32, #tpu.memory_space<vmem>>, vector<1x128xf32>
    %c0_7 = arith.constant 0 : index
    %c0_8 = arith.constant 0 : index
    %4 = vector.load %arg5[%c0_7, %c0_8] : memref<20x32xf32, #tpu.memory_space<vmem>>, vector<20x32xf32>
    %c0_9 = arith.constant 0 : index
    %c0_10 = arith.constant 0 : index
    %5 = vector.load %arg6[%c0_9, %c0_10] : memref<1x32xf32, #tpu.memory_space<vmem>>, vector<1x32xf32>
    %c0_11 = arith.constant 0 : index
    %c0_12 = arith.constant 0 : index
    %6 = vector.load %arg7[%c0_11, %c0_12] : memref<32x64xf32, #tpu.memory_space<vmem>>, vector<32x64xf32>
    %c0_13 = arith.constant 0 : index
    %c0_14 = arith.constant 0 : index
    %7 = vector.load %arg8[%c0_13, %c0_14] : memref<1x64xf32, #tpu.memory_space<vmem>>, vector<1x64xf32>
    %c0_15 = arith.constant 0 : index
    %c0_16 = arith.constant 0 : index
    %8 = vector.load %arg9[%c0_15, %c0_16] : memref<64x2xf32, #tpu.memory_space<vmem>>, vector<64x2xf32>
    %c0_17 = arith.constant 0 : index
    %c0_18 = arith.constant 0 : index
    %9 = vector.load %arg10[%c0_17, %c0_18] : memref<1x2xf32, #tpu.memory_space<vmem>>, vector<1x2xf32>
    %10 = tpu.iota {dimensions = array<i32: 0>} : vector<128x128xi32>
    %11 = vector.broadcast %1 : vector<1x128xi32> to vector<128x128xi32>
    %12 = arith.cmpi eq, %10, %11 : vector<128x128xi32>
    %cst = arith.constant 0.000000e+00 : f32
    %13 = vector.shape_cast %3 : vector<1x128xf32> to vector<1x128xf32>
    %14 = vector.broadcast %13 : vector<1x128xf32> to vector<128x128xf32>
    %15 = vector.broadcast %cst : f32 to vector<128x128xf32>
    %16 = arith.select %12, %14, %15 : vector<128x128xi1>, vector<128x128xf32>
    %17 = arith.truncf %16 : vector<128x128xf32> to vector<128x128xbf16>
    %18 = vector.broadcast %2 : vector<1x128xi32> to vector<128x128xi32>
    %19 = arith.cmpi eq, %10, %18 : vector<128x128xi32>
    %cst_19 = arith.constant 1.000000e+00 : f32
    %cst_20 = arith.constant 0.000000e+00 : f32
    %20 = vector.broadcast %cst_19 : f32 to vector<128x128xf32>
    %21 = vector.broadcast %cst_20 : f32 to vector<128x128xf32>
    %22 = arith.select %19, %20, %21 : vector<128x128xi1>, vector<128x128xf32>
    %23 = arith.truncf %22 : vector<128x128xf32> to vector<128x128xbf16>
    %cst_21 = arith.constant 1.000000e+00 : bf16
    %24 = vector.broadcast %cst_21 : bf16 to vector<128x1xbf16>
    %cst_22 = arith.constant dense<0.000000e+00> : vector<128x1xf32>
    %25 = tpu.matmul %23, %24, %cst_22 {dimension_numbers = #tpu.dot_dimension_numbers<[1], [0], [0], [1], [0, 0, 1, 1], [], []>} : vector<128x128xbf16>, vector<128x1xbf16>, vector<128x1xf32> -> vector<128x1xf32>
    %cst_23 = arith.constant 1.000000e+00 : f32
    %26 = vector.broadcast %cst_23 : f32 to vector<128x1xf32>
    %27 = arith.maximumf %25, %26 : vector<128x1xf32>
    %28 = tpu.reciprocal %27 {approx = true} : vector<128x1xf32> -> vector<128x1xf32>
    %cst_24 = arith.constant dense<0.000000e+00> : vector<128x32xf32>
    %29 = tpu.matmul %0, %4, %cst_24 {dimension_numbers = #tpu.dot_dimension_numbers<[1], [0], [0], [1], [0, 0, 1, 1], [], []>} : vector<128x20xf32>, vector<20x32xf32>, vector<128x32xf32> -> vector<128x32xf32>
    %30 = vector.broadcast %5 : vector<1x32xf32> to vector<128x32xf32>
    %31 = arith.addf %29, %30 : vector<128x32xf32>
    %cst_25 = arith.constant 0.000000e+00 : f32
    %32 = vector.broadcast %cst_25 : f32 to vector<128x32xf32>
    %33 = arith.cmpf oge, %31, %32 : vector<128x32xf32>
    %cst_26 = arith.constant 0.00999999977 : f32
    %34 = vector.broadcast %cst_26 : f32 to vector<128x32xf32>
    %35 = arith.mulf %34, %31 : vector<128x32xf32>
    %36 = arith.select %33, %31, %35 : vector<128x32xi1>, vector<128x32xf32>
    %37 = arith.truncf %29 : vector<128x32xf32> to vector<128x32xbf16>
    %cst_27 = arith.constant dense<0.000000e+00> : vector<128x32xf32>
    %38 = tpu.matmul %17, %37, %cst_27 {dimension_numbers = #tpu.dot_dimension_numbers<[0], [0], [1], [1], [0, 1, 1, 1], [], []>} : vector<128x128xbf16>, vector<128x32xbf16>, vector<128x32xf32> -> vector<128x32xf32>
    %39 = vector.broadcast %5 : vector<1x32xf32> to vector<128x32xf32>
    %40 = arith.addf %38, %39 : vector<128x32xf32>
    %cst_28 = arith.constant 0.000000e+00 : f32
    %41 = vector.broadcast %cst_28 : f32 to vector<128x32xf32>
    %42 = arith.cmpf oge, %40, %41 : vector<128x32xf32>
    %cst_29 = arith.constant 0.00999999977 : f32
    %43 = vector.broadcast %cst_29 : f32 to vector<128x32xf32>
    %44 = arith.mulf %43, %40 : vector<128x32xf32>
    %45 = arith.select %42, %40, %44 : vector<128x32xi1>, vector<128x32xf32>
    %46 = arith.truncf %45 : vector<128x32xf32> to vector<128x32xbf16>
    %cst_30 = arith.constant dense<0.000000e+00> : vector<128x32xf32>
    %47 = tpu.matmul %23, %46, %cst_30 {dimension_numbers = #tpu.dot_dimension_numbers<[1], [0], [0], [1], [0, 0, 1, 1], [], []>} : vector<128x128xbf16>, vector<128x32xbf16>, vector<128x32xf32> -> vector<128x32xf32>
    %48 = vector.broadcast %28 : vector<128x1xf32> to vector<128x32xf32>
    %49 = arith.mulf %47, %48 : vector<128x32xf32>
    %50 = arith.addf %49, %36 : vector<128x32xf32>
    %cst_31 = arith.constant dense<0.000000e+00> : vector<128x64xf32>
    %51 = tpu.matmul %50, %6, %cst_31 {dimension_numbers = #tpu.dot_dimension_numbers<[1], [0], [0], [1], [0, 0, 1, 1], [], []>} : vector<128x32xf32>, vector<32x64xf32>, vector<128x64xf32> -> vector<128x64xf32>
    %52 = vector.broadcast %7 : vector<1x64xf32> to vector<128x64xf32>
    %53 = arith.addf %51, %52 : vector<128x64xf32>
    %cst_32 = arith.constant 0.000000e+00 : f32
    %54 = vector.broadcast %cst_32 : f32 to vector<128x64xf32>
    %55 = arith.cmpf oge, %53, %54 : vector<128x64xf32>
    %cst_33 = arith.constant 0.00999999977 : f32
    %56 = vector.broadcast %cst_33 : f32 to vector<128x64xf32>
    %57 = arith.mulf %56, %53 : vector<128x64xf32>
    %58 = arith.select %55, %53, %57 : vector<128x64xi1>, vector<128x64xf32>
    %59 = arith.truncf %51 : vector<128x64xf32> to vector<128x64xbf16>
    %cst_34 = arith.constant dense<0.000000e+00> : vector<128x64xf32>
    %60 = tpu.matmul %17, %59, %cst_34 {dimension_numbers = #tpu.dot_dimension_numbers<[0], [0], [1], [1], [0, 1, 1, 1], [], []>} : vector<128x128xbf16>, vector<128x64xbf16>, vector<128x64xf32> -> vector<128x64xf32>
    %61 = vector.broadcast %7 : vector<1x64xf32> to vector<128x64xf32>
    %62 = arith.addf %60, %61 : vector<128x64xf32>
    %cst_35 = arith.constant 0.000000e+00 : f32
    %63 = vector.broadcast %cst_35 : f32 to vector<128x64xf32>
    %64 = arith.cmpf oge, %62, %63 : vector<128x64xf32>
    %cst_36 = arith.constant 0.00999999977 : f32
    %65 = vector.broadcast %cst_36 : f32 to vector<128x64xf32>
    %66 = arith.mulf %65, %62 : vector<128x64xf32>
    %67 = arith.select %64, %62, %66 : vector<128x64xi1>, vector<128x64xf32>
    %68 = arith.truncf %67 : vector<128x64xf32> to vector<128x64xbf16>
    %cst_37 = arith.constant dense<0.000000e+00> : vector<128x64xf32>
    %69 = tpu.matmul %23, %68, %cst_37 {dimension_numbers = #tpu.dot_dimension_numbers<[1], [0], [0], [1], [0, 0, 1, 1], [], []>} : vector<128x128xbf16>, vector<128x64xbf16>, vector<128x64xf32> -> vector<128x64xf32>
    %70 = vector.broadcast %28 : vector<128x1xf32> to vector<128x64xf32>
    %71 = arith.mulf %69, %70 : vector<128x64xf32>
    %72 = arith.addf %71, %58 : vector<128x64xf32>
    %73 = tpu.iota {dimensions = array<i32: 1>} : vector<1x128xi32>
    %c8_i32 = arith.constant 8 : i32
    %74 = vector.broadcast %c8_i32 : i32 to vector<1x128xi32>
    %75 = arith.cmpi slt, %73, %74 : vector<1x128xi32>
    %76 = arith.extui %75 : vector<1x128xi1> to vector<1x128xi32>
    %77 = arith.sitofp %76 : vector<1x128xi32> to vector<1x128xf32>
    %cst_38 = arith.constant 1.250000e-01 : f32
    %78 = vector.broadcast %cst_38 : f32 to vector<1x128xf32>
    %79 = arith.mulf %77, %78 : vector<1x128xf32>
    %cst_39 = arith.constant dense<0.000000e+00> : vector<1x64xf32>
    %80 = tpu.matmul %79, %72, %cst_39 {dimension_numbers = #tpu.dot_dimension_numbers<[1], [0], [0], [1], [0, 0, 1, 1], [], []>} : vector<1x128xf32>, vector<128x64xf32>, vector<1x64xf32> -> vector<1x64xf32>
    %cst_40 = arith.constant dense<0.000000e+00> : vector<1x2xf32>
    %81 = tpu.matmul %80, %8, %cst_40 {dimension_numbers = #tpu.dot_dimension_numbers<[1], [0], [0], [1], [0, 0, 1, 1], [], []>} : vector<1x64xf32>, vector<64x2xf32>, vector<1x2xf32> -> vector<1x2xf32>
    %82 = arith.addf %81, %9 : vector<1x2xf32>
    %cst_41 = arith.constant dense<0xFF800000> : vector<1xf32>
    %83 = vector.multi_reduction <maximumf>, %82, %cst_41 [1] : vector<1x2xf32> to vector<1xf32>
    %84 = vector.shape_cast %83 : vector<1xf32> to vector<1x1xf32>
    %85 = vector.broadcast %84 : vector<1x1xf32> to vector<1x2xf32>
    %86 = arith.subf %82, %85 : vector<1x2xf32>
    %87 = math.exp %86 : vector<1x2xf32>
    %cst_42 = arith.constant dense<0.000000e+00> : vector<1xf32>
    %88 = vector.multi_reduction <add>, %87, %cst_42 [1] : vector<1x2xf32> to vector<1xf32>
    %89 = vector.shape_cast %88 : vector<1xf32> to vector<1x1xf32>
    %90 = math.log %89 : vector<1x1xf32>
    %91 = arith.addf %90, %84 : vector<1x1xf32>
    %92 = vector.broadcast %91 : vector<1x1xf32> to vector<1x2xf32>
    %93 = arith.subf %82, %92 : vector<1x2xf32>
    %c0_43 = arith.constant 0 : index
    %c0_44 = arith.constant 0 : index
    %94 = vector.load %arg11[%c0_43, %c0_44] : memref<1x2xf32, #tpu.memory_space<vmem>>, vector<1x2xf32>
    tpu.vector_store %arg11[%c0_43, %c0_44], %93 {strides = array<i32>} : memref<1x2xf32, #tpu.memory_space<vmem>>, vector<1x2xf32>,
    return
  }
  func.func @transform_0(%arg0: i32) -> (i32, i32) {
    %c0_i32 = arith.constant 0 : i32
    %c0_i32_0 = arith.constant 0 : i32
    %c0_i32_1 = arith.constant 0 : i32
    return %c0_i32, %c0_i32_0 : i32, i32
  }
  func.func @transform_1(%arg0: i32) -> (i32, i32) {
    %c0_i32 = arith.constant 0 : i32
    %c0_i32_0 = arith.constant 0 : i32
    %c0_i32_1 = arith.constant 0 : i32
    return %c0_i32, %c0_i32_0 : i32, i32
  }
  func.func @transform_2(%arg0: i32) -> (i32, i32) {
    %c0_i32 = arith.constant 0 : i32
    %c0_i32_0 = arith.constant 0 : i32
    %c0_i32_1 = arith.constant 0 : i32
    return %c0_i32, %c0_i32_0 : i32, i32
  }
  func.func @transform_3(%arg0: i32) -> (i32, i32) {
    %c0_i32 = arith.constant 0 : i32
    %c0_i32_0 = arith.constant 0 : i32
    %c0_i32_1 = arith.constant 0 : i32
    return %c0_i32, %c0_i32_0 : i32, i32
  }
  func.func @transform_4(%arg0: i32) -> (i32, i32) {
    %c0_i32 = arith.constant 0 : i32
    %c0_i32_0 = arith.constant 0 : i32
    %c0_i32_1 = arith.constant 0 : i32
    return %c0_i32, %c0_i32_0 : i32, i32
  }
  func.func @transform_5(%arg0: i32) -> (i32, i32) {
    %c0_i32 = arith.constant 0 : i32
    %c0_i32_0 = arith.constant 0 : i32
    %c0_i32_1 = arith.constant 0 : i32
    return %c0_i32, %c0_i32_0 : i32, i32
  }
  func.func @transform_6(%arg0: i32) -> (i32, i32) {
    %c0_i32 = arith.constant 0 : i32
    %c0_i32_0 = arith.constant 0 : i32
    %c0_i32_1 = arith.constant 0 : i32
    return %c0_i32, %c0_i32_0 : i32, i32
  }
  func.func @transform_7(%arg0: i32) -> (i32, i32) {
    %c0_i32 = arith.constant 0 : i32
    %c0_i32_0 = arith.constant 0 : i32
    %c0_i32_1 = arith.constant 0 : i32
    return %c0_i32, %c0_i32_0 : i32, i32
  }
  func.func @transform_8(%arg0: i32) -> (i32, i32) {
    %c0_i32 = arith.constant 0 : i32
    %c0_i32_0 = arith.constant 0 : i32
    %c0_i32_1 = arith.constant 0 : i32
    return %c0_i32, %c0_i32_0 : i32, i32
  }
  func.func @transform_9(%arg0: i32) -> (i32, i32) {
    %c0_i32 = arith.constant 0 : i32
    %c0_i32_0 = arith.constant 0 : i32
    %c0_i32_1 = arith.constant 0 : i32
    return %c0_i32, %c0_i32_0 : i32, i32
  }
  func.func @transform_10(%arg0: i32) -> (i32, i32) {
    %c0_i32 = arith.constant 0 : i32
    %c0_i32_0 = arith.constant 0 : i32
    %c0_i32_1 = arith.constant 0 : i32
    return %c0_i32, %c0_i32_0 : i32, i32
  }
}

</mosaic_0001>

<llo_original>
// kernel: tpu_custom_call.1
$region0: #{tpu_custom_call.1}
  #allocation0 [shape = 'u32[]', space=smem, size = 0x4, offset = 0x4, fixed_abs, tag = 'smem constant byte address 0x4 - core index']
  #allocation1 [shape = 'u32[144,128]{1,0:T(1,128)}', space=vmem, size = 0x12000, scoped, tag = 'internal scratch']
  %s0 = inlined_call_operand.hbm [shape: f32[128,20], index: 0, kind: input, shape index: {}]
  %s1 = inlined_call_operand.hbm [shape: s32[1,128], index: 1, kind: input, shape index: {}]
  %s2 = inlined_call_operand.hbm [shape: s32[1,128], index: 2, kind: input, shape index: {}]
  %s3 = inlined_call_operand.hbm [shape: f32[1,128], index: 3, kind: input, shape index: {}]
  %s4 = inlined_call_operand.hbm [shape: f32[20,32], index: 4, kind: input, shape index: {}]
  %s5 = inlined_call_operand.hbm [shape: f32[1,32], index: 5, kind: input, shape index: {}]
  %s6 = inlined_call_operand.hbm [shape: f32[32,64], index: 6, kind: input, shape index: {}]
  %s7 = inlined_call_operand.hbm [shape: f32[1,64], index: 7, kind: input, shape index: {}]
  %s8 = inlined_call_operand.hbm [shape: f32[64,2], index: 8, kind: input, shape index: {}]
  %s9 = inlined_call_operand.hbm [shape: f32[1,2], index: 9, kind: input, shape index: {}]
  %s10 = inlined_call_operand.hbm [shape: f32[1,2], index: 10, kind: output, shape index: {}]
  %s11 = sld [smem:[#allocation0]]
  $region90: #{tpu_custom_call.1} parent=0
    _
  %s13 = ssub.s32 1, %s11
  %s14 = scalar_select 0, %s13, %s11
  $region1: #{tpu_custom_call.1} parent=0
    #allocation2 [shape = 'u8[65536]{0}', space=vmem, size = 0x10000, scoped, tag = 'input window, operand 0, single buffered']
    #allocation3 [shape = 's32[1]{0}', space=sflag, size = 0x4, scoped, tag = 'scoped memory for tpu_custom_call.1']
    #allocation4 [shape = 's32[1]{0}', space=sflag, size = 0x4, scoped, tag = 'scoped memory for tpu_custom_call.1']
    #allocation5 [shape = 'u8[512]{0}', space=vmem, size = 0x400, scoped, tag = 'input window, operand 1, single buffered']
    #allocation6 [shape = 's32[1]{0}', space=sflag, size = 0x4, scoped, tag = 'scoped memory for tpu_custom_call.1']
    #allocation7 [shape = 'u8[512]{0}', space=vmem, size = 0x400, scoped, tag = 'input window, operand 2, single buffered']
    #allocation8 [shape = 'u8[512]{0}', space=vmem, size = 0x400, scoped, tag = 'input window, operand 3, single buffered']
    #allocation9 [shape = 's32[1]{0}', space=sflag, size = 0x4, scoped, tag = 'scoped memory for tpu_custom_call.1']
    #allocation10 [shape = 'u8[12288]{0}', space=vmem, size = 0x3000, scoped, tag = 'input window, operand 4, single buffered']
    #allocation11 [shape = 'u8[512]{0}', space=vmem, size = 0x400, scoped, tag = 'input window, operand 5, single buffered']
    #allocation12 [shape = 's32[1]{0}', space=sflag, size = 0x4, scoped, tag = 'scoped memory for tpu_custom_call.1']
    #allocation13 [shape = 'u8[16384]{0}', space=vmem, size = 0x4000, scoped, tag = 'input window, operand 6, single buffered']
    #allocation14 [shape = 'u8[512]{0}', space=vmem, size = 0x400, scoped, tag = 'input window, operand 7, single buffered']
    #allocation15 [shape = 's32[1]{0}', space=sflag, size = 0x4, scoped, tag = 'scoped memory for tpu_custom_call.1']
    #allocation16 [shape = 'u8[32768]{0}', space=vmem, size = 0x8000, scoped, tag = 'input window, operand 8, single buffered']
    #allocation17 [shape = 'u8[512]{0}', space=vmem, size = 0x400, scoped, tag = 'input window, operand 9, single buffered']
    #allocation18 [shape = 's32[1]{0}', space=sflag, size = 0x4, scoped, tag = 'scoped memory for tpu_custom_call.1']
    #allocation19 [shape = 'u8[512]{0}', space=vmem, size = 0x400, scoped, tag = 'output window, operand 0, single buffered']
    %15 = vsyncpa [#allocation3], 0
    %16 = vsyncpa [#allocation6], 0
    %17 = vsyncpa [#allocation9], 0
    %18 = vsyncpa [#allocation12], 0
    %19 = vsyncpa [#allocation15], 0
    %20 = vsyncpa [#allocation18], 0
    %21 = vsyncpa [#allocation4], 0
    // Predicated region
    $region2: #{tpu_custom_call.1} parent=1 // pred_check
      _
    $region3: #{tpu_custom_call.1} parent=1 // pred_check_branch
      %23 = sbr.rel (0) target = $region5
    $region4: #{tpu_custom_call.1} parent=1 // pred_region
      %s25 = ssub.s32 2048, 2048
      %26 = vsyncadd [#allocation3], %s25
      %s27 = sshll.u32 [#allocation2], 4
      %s28 = int_to_ptr.vmem [resolvable:$true] %s27
      %33 = dma.hbm_to_vmem [thread:$0]  %s0, 2048, %s28, [#allocation3], 128, 128, 8
    $region5: #{tpu_custom_call.1} parent=1 // pred_fallthru
      _
    // Predicated region
    $region6: #{tpu_custom_call.1} parent=1 // pred_check
      _
    $region7: #{tpu_custom_call.1} parent=1 // pred_check_branch
      %35 = sbr.rel (0) target = $region9
    $region8: #{tpu_custom_call.1} parent=1 // pred_region
      %s37 = ssub.s32 16, 16
      %38 = vsyncadd [#allocation6], %s37
      %s40 = sshll.u32 [#allocation5], 4
      %s41 = int_to_ptr.vmem [resolvable:$true] %s40
      %43 = dma.hbm_to_vmem [thread:$0]  %s1, 16, %s41, [#allocation6]
    $region9: #{tpu_custom_call.1} parent=1 // pred_fallthru
      _
    // Predicated region
    $region10: #{tpu_custom_call.1} parent=1 // pred_check
      _
    $region11: #{tpu_custom_call.1} parent=1 // pred_check_branch
      %45 = sbr.rel (0) target = $region13
    $region12: #{tpu_custom_call.1} parent=1 // pred_region
      %s47 = ssub.s32 16, 16
      %48 = vsyncadd [#allocation6], %s47
      %s50 = sshll.u32 [#allocation7], 4
      %s51 = int_to_ptr.vmem [resolvable:$true] %s50
      %53 = dma.hbm_to_vmem [thread:$0]  %s2, 16, %s51, [#allocation6]
    $region13: #{tpu_custom_call.1} parent=1 // pred_fallthru
      _
    // Predicated region
    $region14: #{tpu_custom_call.1} parent=1 // pred_check
      _
    $region15: #{tpu_custom_call.1} parent=1 // pred_check_branch
      %55 = sbr.rel (0) target = $region17
    $region16: #{tpu_custom_call.1} parent=1 // pred_region
      %s57 = ssub.s32 16, 16
      %58 = vsyncadd [#allocation9], %s57
      %s60 = sshll.u32 [#allocation8], 4
      %s61 = int_to_ptr.vmem [resolvable:$true] %s60
      %63 = dma.hbm_to_vmem [thread:$0]  %s3, 16, %s61, [#allocation9]
    $region17: #{tpu_custom_call.1} parent=1 // pred_fallthru
      _
    // Predicated region
    $region18: #{tpu_custom_call.1} parent=1 // pred_check
      _
    $region19: #{tpu_custom_call.1} parent=1 // pred_check_branch
      %65 = sbr.rel (0) target = $region21
    $region20: #{tpu_custom_call.1} parent=1 // pred_region
      %s67 = ssub.s32 384, 384
      %68 = vsyncadd [#allocation9], %s67
      %s69 = sshll.u32 [#allocation10], 4
      %s70 = int_to_ptr.vmem [resolvable:$true] %s69
      %75 = dma.hbm_to_vmem [thread:$0]  %s4, 384, %s70, [#allocation9], 128, 128, 8
    $region21: #{tpu_custom_call.1} parent=1 // pred_fallthru
      _
    // Predicated region
    $region22: #{tpu_custom_call.1} parent=1 // pred_check
      _
    $region23: #{tpu_custom_call.1} parent=1 // pred_check_branch
      %77 = sbr.rel (0) target = $region25
    $region24: #{tpu_custom_call.1} parent=1 // pred_region
      %s79 = ssub.s32 16, 16
      %80 = vsyncadd [#allocation12], %s79
      %s82 = sshll.u32 [#allocation11], 4
      %s83 = int_to_ptr.vmem [resolvable:$true] %s82
      %85 = dma.hbm_to_vmem [thread:$0]  %s5, 16, %s83, [#allocation12]
    $region25: #{tpu_custom_call.1} parent=1 // pred_fallthru
      _
    // Predicated region
    $region26: #{tpu_custom_call.1} parent=1 // pred_check
      _
    $region27: #{tpu_custom_call.1} parent=1 // pred_check_branch
      %87 = sbr.rel (0) target = $region29
    $region28: #{tpu_custom_call.1} parent=1 // pred_region
      %s89 = ssub.s32 512, 512
      %90 = vsyncadd [#allocation12], %s89
      %s91 = sshll.u32 [#allocation13], 4
      %s92 = int_to_ptr.vmem [resolvable:$true] %s91
      %97 = dma.hbm_to_vmem [thread:$0]  %s6, 512, %s92, [#allocation12], 128, 128, 8
    $region29: #{tpu_custom_call.1} parent=1 // pred_fallthru
      _
    // Predicated region
    $region30: #{tpu_custom_call.1} parent=1 // pred_check
      _
    $region31: #{tpu_custom_call.1} parent=1 // pred_check_branch
      %99 = sbr.rel (0) target = $region33
    $region32: #{tpu_custom_call.1} parent=1 // pred_region
      %s101 = ssub.s32 16, 16
      %102 = vsyncadd [#allocation15], %s101
      %s104 = sshll.u32 [#allocation14], 4
      %s105 = int_to_ptr.vmem [resolvable:$true] %s104
      %107 = dma.hbm_to_vmem [thread:$0]  %s7, 16, %s105, [#allocation15]
    $region33: #{tpu_custom_call.1} parent=1 // pred_fallthru
      _
    // Predicated region
    $region34: #{tpu_custom_call.1} parent=1 // pred_check
      _
    $region35: #{tpu_custom_call.1} parent=1 // pred_check_branch
      %109 = sbr.rel (0) target = $region37
    $region36: #{tpu_custom_call.1} parent=1 // pred_region
      %s111 = ssub.s32 1024, 1024
      %112 = vsyncadd [#allocation15], %s111
      %s113 = sshll.u32 [#allocation16], 4
      %s114 = int_to_ptr.vmem [resolvable:$true] %s113
      %119 = dma.hbm_to_vmem [thread:$0]  %s8, 1024, %s114, [#allocation15], 128, 128, 8
    $region37: #{tpu_custom_call.1} parent=1 // pred_fallthru
      _
    // Predicated region
    $region38: #{tpu_custom_call.1} parent=1 // pred_check
      _
    $region39: #{tpu_custom_call.1} parent=1 // pred_check_branch
      %121 = sbr.rel (0) target = $region41
    $region40: #{tpu_custom_call.1} parent=1 // pred_region
      %s123 = ssub.s32 16, 16
      %124 = vsyncadd [#allocation18], %s123
      %s126 = sshll.u32 [#allocation17], 4
      %s127 = int_to_ptr.vmem [resolvable:$true] %s126
      %129 = dma.hbm_to_vmem [thread:$0]  %s9, 16, %s127, [#allocation18]
    $region41: #{tpu_custom_call.1} parent=1 // pred_fallthru
      _
    // Predicated region
    $region42: #{tpu_custom_call.1} parent=1 // pred_check
      _
    $region43: #{tpu_custom_call.1} parent=1 // pred_check_branch
      %131 = sbr.rel (0) target = $region45
    $region44: #{tpu_custom_call.1} parent=1 // pred_region
      %132 = dma.done [#allocation3], 2048
    $region45: #{tpu_custom_call.1} parent=1 // pred_fallthru
      _
    // Predicated region
    $region46: #{tpu_custom_call.1} parent=1 // pred_check
      _
    $region47: #{tpu_custom_call.1} parent=1 // pred_check_branch
      %134 = sbr.rel (0) target = $region49
    $region48: #{tpu_custom_call.1} parent=1 // pred_region
      %135 = dma.done [#allocation6], 16
    $region49: #{tpu_custom_call.1} parent=1 // pred_fallthru
      _
    // Predicated region
    $region50: #{tpu_custom_call.1} parent=1 // pred_check
      _
    $region51: #{tpu_custom_call.1} parent=1 // pred_check_branch
      %137 = sbr.rel (0) target = $region53
    $region52: #{tpu_custom_call.1} parent=1 // pred_region
      %138 = dma.done [#allocation6], 16
    $region53: #{tpu_custom_call.1} parent=1 // pred_fallthru
      _
    // Predicated region
    $region54: #{tpu_custom_call.1} parent=1 // pred_check
      _
    $region55: #{tpu_custom_call.1} parent=1 // pred_check_branch
      %140 = sbr.rel (0) target = $region57
    $region56: #{tpu_custom_call.1} parent=1 // pred_region
      %141 = dma.done [#allocation9], 16
    $region57: #{tpu_custom_call.1} parent=1 // pred_fallthru
      _
    // Predicated region
    $region58: #{tpu_custom_call.1} parent=1 // pred_check
      _
    $region59: #{tpu_custom_call.1} parent=1 // pred_check_branch
      %143 = sbr.rel (0) target = $region61
    $region60: #{tpu_custom_call.1} parent=1 // pred_region
      %144 = dma.done [#allocation9], 384
    $region61: #{tpu_custom_call.1} parent=1 // pred_fallthru
      _
    // Predicated region
    $region62: #{tpu_custom_call.1} parent=1 // pred_check
      _
    $region63: #{tpu_custom_call.1} parent=1 // pred_check_branch
      %146 = sbr.rel (0) target = $region65
    $region64: #{tpu_custom_call.1} parent=1 // pred_region
      %147 = dma.done [#allocation12], 16
    $region65: #{tpu_custom_call.1} parent=1 // pred_fallthru
      _
    // Predicated region
    $region66: #{tpu_custom_call.1} parent=1 // pred_check
      _
    $region67: #{tpu_custom_call.1} parent=1 // pred_check_branch
      %149 = sbr.rel (0) target = $region69
    $region68: #{tpu_custom_call.1} parent=1 // pred_region
      %150 = dma.done [#allocation12], 512
    $region69: #{tpu_custom_call.1} parent=1 // pred_fallthru
      _
    // Predicated region
    $region70: #{tpu_custom_call.1} parent=1 // pred_check
      _
    $region71: #{tpu_custom_call.1} parent=1 // pred_check_branch
      %152 = sbr.rel (0) target = $region73
    $region72: #{tpu_custom_call.1} parent=1 // pred_region
      %153 = dma.done [#allocation15], 16
    $region73: #{tpu_custom_call.1} parent=1 // pred_fallthru
      _
    // Predicated region
    $region74: #{tpu_custom_call.1} parent=1 // pred_check
      _
    $region75: #{tpu_custom_call.1} parent=1 // pred_check_branch
      %155 = sbr.rel (0) target = $region77
    $region76: #{tpu_custom_call.1} parent=1 // pred_region
      %156 = dma.done [#allocation15], 1024
    $region77: #{tpu_custom_call.1} parent=1 // pred_fallthru
      _
    // Predicated region
    $region78: #{tpu_custom_call.1} parent=1 // pred_check
      _
    $region79: #{tpu_custom_call.1} parent=1 // pred_check_branch
      %158 = sbr.rel (0) target = $region81
    $region80: #{tpu_custom_call.1} parent=1 // pred_region
      %159 = dma.done [#allocation18], 16
    $region81: #{tpu_custom_call.1} parent=1 // pred_fallthru
      _
    %v162 = vld [vmem:[#allocation2] sm:$0xff]
    %v163 = vld [vmem:[#allocation2 + $0x8] sm:$0xff]
    %v164 = vld [vmem:[#allocation2 + $0x10] sm:$0xff]
    %v165 = vld [vmem:[#allocation2 + $0x18] sm:$0xff]
    %v166 = vld [vmem:[#allocation2 + $0x20] sm:$0xff]
    %v167 = vld [vmem:[#allocation2 + $0x28] sm:$0xff]
    %v168 = vld [vmem:[#allocation2 + $0x30] sm:$0xff]
    %v169 = vld [vmem:[#allocation2 + $0x38] sm:$0xff]
    %v170 = vld [vmem:[#allocation2 + $0x40] sm:$0xff]
    %v171 = vld [vmem:[#allocation2 + $0x48] sm:$0xff]
    %v172 = vld [vmem:[#allocation2 + $0x50] sm:$0xff]
    %v173 = vld [vmem:[#allocation2 + $0x58] sm:$0xff]
    %v174 = vld [vmem:[#allocation2 + $0x60] sm:$0xff]
    %v175 = vld [vmem:[#allocation2 + $0x68] sm:$0xff]
    %v176 = vld [vmem:[#allocation2 + $0x70] sm:$0xff]
    %v177 = vld [vmem:[#allocation2 + $0x78] sm:$0xff]
    %v178 = vld [vmem:[#allocation5] sm:$0x1]
    %v179 = vld [vmem:[#allocation7] sm:$0x1]
    %v180 = vld [vmem:[#allocation8] sm:$0x1]
    %v181 = vld [vmem:[#allocation10] sm:$0xff]
    %v182 = vld [vmem:[#allocation10 + $0x8] sm:$0xff]
    %v183 = vld [vmem:[#allocation10 + $0x10] sm:$0xf]
    %v184 = vld [vmem:[#allocation11] sm:$0x1]
    %v185 = vld [vmem:[#allocation13] sm:$0xff]
    %v186 = vld [vmem:[#allocation13 + $0x8] sm:$0xff]
    %v187 = vld [vmem:[#allocation13 + $0x10] sm:$0xff]
    %v188 = vld [vmem:[#allocation13 + $0x18] sm:$0xff]
    %v189 = vld [vmem:[#allocation14] sm:$0x1]
    %v190 = vld [vmem:[#allocation16] sm:$0xff]
    %v191 = vld [vmem:[#allocation16 + $0x8] sm:$0xff]
    %v192 = vld [vmem:[#allocation16 + $0x10] sm:$0xff]
    %v193 = vld [vmem:[#allocation16 + $0x18] sm:$0xff]
    %v194 = vld [vmem:[#allocation16 + $0x20] sm:$0xff]
    %v195 = vld [vmem:[#allocation16 + $0x28] sm:$0xff]
    %v196 = vld [vmem:[#allocation16 + $0x30] sm:$0xff]
    %v197 = vld [vmem:[#allocation16 + $0x38] sm:$0xff]
    %v198 = vld [vmem:[#allocation17] sm:$0x1]
    %v199 = vlaneseq
    %v200 = vshrl.u32 %v199, 7
    %v201 = vadd.s32 %v200, 8
    %v202 = vadd.s32 %v200, 16
    %v203 = vadd.s32 %v200, 24
    %v204 = vadd.s32 %v200, 32
    %v205 = vadd.s32 %v200, 40
    %v206 = vadd.s32 %v200, 48
    %v207 = vadd.s32 %v200, 56
    %v208 = vadd.s32 %v200, 64
    %v209 = vadd.s32 %v200, 72
    %v210 = vadd.s32 %v200, 80
    %v211 = vadd.s32 %v200, 88
    %v212 = vadd.s32 %v200, 96
    %v213 = vadd.s32 %v200, 104
    %v214 = vadd.s32 %v200, 112
    %v215 = vadd.s32 %v200, 120
    %v216 = vlaneseq
    %v217 = vshrl.u32 %v216, 7
    %v218 = vsub.s32 0, %v217
    %v219 = vrot.slane %v178, %v218
    %vm220 = vcmp.eq.s32.totalorder %v200, %v219
    %vm221 = vcmp.eq.s32.totalorder %v201, %v219
    %vm222 = vcmp.eq.s32.totalorder %v202, %v219
    %vm223 = vcmp.eq.s32.totalorder %v203, %v219
    %vm224 = vcmp.eq.s32.totalorder %v204, %v219
    %vm225 = vcmp.eq.s32.totalorder %v205, %v219
    %vm226 = vcmp.eq.s32.totalorder %v206, %v219
    %vm227 = vcmp.eq.s32.totalorder %v207, %v219
    %vm228 = vcmp.eq.s32.totalorder %v208, %v219
    %vm229 = vcmp.eq.s32.totalorder %v209, %v219
    %vm230 = vcmp.eq.s32.totalorder %v210, %v219
    %vm231 = vcmp.eq.s32.totalorder %v211, %v219
    %vm232 = vcmp.eq.s32.totalorder %v212, %v219
    %vm233 = vcmp.eq.s32.totalorder %v213, %v219
    %vm234 = vcmp.eq.s32.totalorder %v214, %v219
    %vm235 = vcmp.eq.s32.totalorder %v215, %v219
    %v237 = vlaneseq
    %v238 = vshrl.u32 %v237, 7
    %v239 = vsub.s32 0, %v238
    %v240 = vrot.slane %v180, %v239
    %v242 = vsel %vm220, %v240, 0.0
    %v243 = vsel %vm221, %v240, 0.0
    %v244 = vsel %vm222, %v240, 0.0
    %v245 = vsel %vm223, %v240, 0.0
    %v246 = vsel %vm224, %v240, 0.0
    %v247 = vsel %vm225, %v240, 0.0
    %v248 = vsel %vm226, %v240, 0.0
    %v249 = vsel %vm227, %v240, 0.0
    %v250 = vsel %vm228, %v240, 0.0
    %v251 = vsel %vm229, %v240, 0.0
    %v252 = vsel %vm230, %v240, 0.0
    %v253 = vsel %vm231, %v240, 0.0
    %v254 = vsel %vm232, %v240, 0.0
    %v255 = vsel %vm233, %v240, 0.0
    %v256 = vsel %vm234, %v240, 0.0
    %v257 = vsel %vm235, %v240, 0.0
    %v258 = vpack.c.bf16 %v243, %v242
    %v259 = vpack.c.bf16 %v245, %v244
    %v260 = vpack.c.bf16 %v247, %v246
    %v261 = vpack.c.bf16 %v249, %v248
    %v262 = vpack.c.bf16 %v251, %v250
    %v263 = vpack.c.bf16 %v253, %v252
    %v264 = vpack.c.bf16 %v255, %v254
    %v265 = vpack.c.bf16 %v257, %v256
    %v266 = vlaneseq
    %v267 = vshrl.u32 %v266, 7
    %v268 = vsub.s32 0, %v267
    %v269 = vrot.slane %v179, %v268
    %vm270 = vcmp.eq.s32.totalorder %v200, %v269
    %vm271 = vcmp.eq.s32.totalorder %v201, %v269
    %vm272 = vcmp.eq.s32.totalorder %v202, %v269
    %vm273 = vcmp.eq.s32.totalorder %v203, %v269
    %vm274 = vcmp.eq.s32.totalorder %v204, %v269
    %vm275 = vcmp.eq.s32.totalorder %v205, %v269
    %vm276 = vcmp.eq.s32.totalorder %v206, %v269
    %vm277 = vcmp.eq.s32.totalorder %v207, %v269
    %vm278 = vcmp.eq.s32.totalorder %v208, %v269
    %vm279 = vcmp.eq.s32.totalorder %v209, %v269
    %vm280 = vcmp.eq.s32.totalorder %v210, %v269
    %vm281 = vcmp.eq.s32.totalorder %v211, %v269
    %vm282 = vcmp.eq.s32.totalorder %v212, %v269
    %vm283 = vcmp.eq.s32.totalorder %v213, %v269
    %vm284 = vcmp.eq.s32.totalorder %v214, %v269
    %vm285 = vcmp.eq.s32.totalorder %v215, %v269
    %v286 = vsel %vm270, 1.0, 0.0
    %v287 = vsel %vm271, 1.0, 0.0
    %v288 = vsel %vm272, 1.0, 0.0
    %v289 = vsel %vm273, 1.0, 0.0
    %v290 = vsel %vm274, 1.0, 0.0
    %v291 = vsel %vm275, 1.0, 0.0
    %v292 = vsel %vm276, 1.0, 0.0
    %v293 = vsel %vm277, 1.0, 0.0
    %v294 = vsel %vm278, 1.0, 0.0
    %v295 = vsel %vm279, 1.0, 0.0
    %v296 = vsel %vm280, 1.0, 0.0
    %v297 = vsel %vm281, 1.0, 0.0
    %v298 = vsel %vm282, 1.0, 0.0
    %v299 = vsel %vm283, 1.0, 0.0
    %v300 = vsel %vm284, 1.0, 0.0
    %v301 = vsel %vm285, 1.0, 0.0
    %v302 = vpack.c.bf16 %v287, %v286
    %v303 = vpack.c.bf16 %v289, %v288
    %v304 = vpack.c.bf16 %v291, %v290
    %v305 = vpack.c.bf16 %v293, %v292
    %v306 = vpack.c.bf16 %v295, %v294
    %v307 = vpack.c.bf16 %v297, %v296
    %v308 = vpack.c.bf16 %v299, %v298
    %v309 = vpack.c.bf16 %v301, %v300
    %310 = vmatprep.subr.bf16.mxu0 0
    %311 = vmatpush1.bf16.msra.mxu0 1065369472
    %312 = vmatprep.subr.bf16.mxu0 0
    %313 = vmatpush1.bf16.msra.mxu0 1065369472
    %314 = vmatprep.subr.bf16.mxu0 0
    %315 = vmatpush1.bf16.msra.mxu0 1065369472
    %316 = vmatprep.subr.bf16.mxu0 0
    %317 = vmatpush1.bf16.msra.mxu0 1065369472
    %318 = vmatprep.subr.bf16.mxu0 0
    %319 = vmatpush1.bf16.msra.mxu0 1065369472
    %320 = vmatprep.subr.bf16.mxu0 0
    %321 = vmatpush1.bf16.msra.mxu0 1065369472
    %322 = vmatprep.subr.bf16.mxu0 0
    %323 = vmatpush1.bf16.msra.mxu0 1065369472
    %324 = vmatprep.subr.bf16.mxu0 0
    %325 = vmatpush1.bf16.msra.mxu0 1065369472
    %326 = vmatprep.subr.bf16.mxu0 0
    %327 = vmatpush1.bf16.msra.mxu0 0
    %328 = vmatprep.subr.bf16.mxu0 0
    %329 = vmatpush1.bf16.msra.mxu0 0
    %330 = vmatprep.subr.bf16.mxu0 0
    %331 = vmatpush1.bf16.msra.mxu0 0
    %332 = vmatprep.subr.bf16.mxu0 0
    %333 = vmatpush1.bf16.msra.mxu0 0
    %334 = vmatprep.subr.bf16.mxu0 0
    %335 = vmatpush1.bf16.msra.mxu0 0
    %336 = vmatprep.subr.bf16.mxu0 0
    %337 = vmatpush1.bf16.msra.mxu0 0
    %338 = vmatprep.subr.bf16.mxu0 0
    %339 = vmatpush1.bf16.msra.mxu0 0
    %340 = vmatprep.subr.bf16.mxu0 0
    %341 = vmatpush1.bf16.msra.mxu0 0
    %342 = vmatprep.mubr.bf16.mxu0 0
    %343 = vmatmul.mubr.bf16.gmra.mrb[0].mxu0 %v302
    %v344 = vpop.f32.mrb[0].mxu0
    %v345 = vadd.f32 0.0, %v344
    %v346 = vpop.f32.mrb[0].mxu0
    %v347 = vpop.f32.mrb[0].mxu0
    %v348 = vadd.f32 0.0, %v347
    %v349 = vpop.f32.mrb[0].mxu0
    %350 = vmatprep.mubr.bf16.mxu0 0
    %351 = vmatmul.mubr.bf16.gmra.mrb[0].mxu0 %v303
    %v352 = vpop.f32.mrb[0].mxu0
    %v353 = vadd.f32 0.0, %v352
    %v354 = vpop.f32.mrb[0].mxu0
    %v355 = vpop.f32.mrb[0].mxu0
    %v356 = vadd.f32 0.0, %v355
    %v357 = vpop.f32.mrb[0].mxu0
    %358 = vmatprep.mubr.bf16.mxu0 0
    %359 = vmatmul.mubr.bf16.gmra.mrb[0].mxu0 %v304
    %v360 = vpop.f32.mrb[0].mxu0
    %v361 = vadd.f32 0.0, %v360
    %v362 = vpop.f32.mrb[0].mxu0
    %v363 = vpop.f32.mrb[0].mxu0
    %v364 = vadd.f32 0.0, %v363
    %v365 = vpop.f32.mrb[0].mxu0
    %366 = vmatprep.mubr.bf16.mxu0 0
    %367 = vmatmul.mubr.bf16.gmra.mrb[0].mxu0 %v305
    %v368 = vpop.f32.mrb[0].mxu0
    %v369 = vadd.f32 0.0, %v368
    %v370 = vpop.f32.mrb[0].mxu0
    %v371 = vpop.f32.mrb[0].mxu0
    %v372 = vadd.f32 0.0, %v371
    %v373 = vpop.f32.mrb[0].mxu0
    %374 = vmatprep.mubr.bf16.mxu0 0
    %375 = vmatmul.mubr.bf16.gmra.mrb[0].mxu0 %v306
    %v376 = vpop.f32.mrb[0].mxu0
    %v377 = vadd.f32 0.0, %v376
    %v378 = vpop.f32.mrb[0].mxu0
    %v379 = vpop.f32.mrb[0].mxu0
    %v380 = vadd.f32 0.0, %v379
    %v381 = vpop.f32.mrb[0].mxu0
    %382 = vmatprep.mubr.bf16.mxu0 0
    %383 = vmatmul.mubr.bf16.gmra.mrb[0].mxu0 %v307
    %v384 = vpop.f32.mrb[0].mxu0
    %v385 = vadd.f32 0.0, %v384
    %v386 = vpop.f32.mrb[0].mxu0
    %v387 = vpop.f32.mrb[0].mxu0
    %v388 = vadd.f32 0.0, %v387
    %v389 = vpop.f32.mrb[0].mxu0
    %390 = vmatprep.mubr.bf16.mxu0 0
    %391 = vmatmul.mubr.bf16.gmra.mrb[0].mxu0 %v308
    %v392 = vpop.f32.mrb[0].mxu0
    %v393 = vadd.f32 0.0, %v392
    %v394 = vpop.f32.mrb[0].mxu0
    %v395 = vpop.f32.mrb[0].mxu0
    %v396 = vadd.f32 0.0, %v395
    %v397 = vpop.f32.mrb[0].mxu0
    %398 = vmatprep.mubr.bf16.mxu0 0
    %399 = vmatmul.mubr.bf16.gmra.mrb[0].mxu0 %v309
    %v400 = vpop.f32.mrb[0].mxu0
    %v401 = vadd.f32 0.0, %v400
    %v402 = vpop.f32.mrb[0].mxu0
    %v403 = vpop.f32.mrb[0].mxu0
    %v404 = vadd.f32 0.0, %v403
    %v405 = vpop.f32.mrb[0].mxu0
    %406 = vdwg.mxu0
    %v407 = vmax.f32 %v345, 1.0
    %v408 = vmax.f32 %v348, 1.0
    %v409 = vmax.f32 %v353, 1.0
    %v410 = vmax.f32 %v356, 1.0
    %v411 = vmax.f32 %v361, 1.0
    %v412 = vmax.f32 %v364, 1.0
    %v413 = vmax.f32 %v369, 1.0
    %v414 = vmax.f32 %v372, 1.0
    %v415 = vmax.f32 %v377, 1.0
    %v416 = vmax.f32 %v380, 1.0
    %v417 = vmax.f32 %v385, 1.0
    %v418 = vmax.f32 %v388, 1.0
    %v419 = vmax.f32 %v393, 1.0
    %v420 = vmax.f32 %v396, 1.0
    %v421 = vmax.f32 %v401, 1.0
    %v422 = vmax.f32 %v404, 1.0
    %v423 = vrcp.pop %v407
    %v424 = vrcp.pop %v408
    %v425 = vrcp.pop %v409
    %v426 = vrcp.pop %v410
    %v427 = vrcp.pop %v411
    %v428 = vrcp.pop %v412
    %v429 = vrcp.pop %v413
    %v430 = vrcp.pop %v414
    %v431 = vrcp.pop %v415
    %v432 = vrcp.pop %v416
    %v433 = vrcp.pop %v417
    %v434 = vrcp.pop %v418
    %v435 = vrcp.pop %v419
    %v436 = vrcp.pop %v420
    %v437 = vrcp.pop %v421
    %v438 = vrcp.pop %v422
    %vm439 = vcmask 162816
    %v441 = vsel %vm439, %v162, 0
    %v444 = vsel %vm439, %v163, 0
    %v447 = vsel %vm439, %v164, 0
    %v450 = vsel %vm439, %v165, 0
    %v453 = vsel %vm439, %v166, 0
    %v456 = vsel %vm439, %v167, 0
    %v459 = vsel %vm439, %v168, 0
    %v462 = vsel %vm439, %v169, 0
    %v465 = vsel %vm439, %v170, 0
    %v468 = vsel %vm439, %v171, 0
    %v471 = vsel %vm439, %v172, 0
    %v474 = vsel %vm439, %v173, 0
    %v477 = vsel %vm439, %v174, 0
    %v480 = vsel %vm439, %v175, 0
    %v483 = vsel %vm439, %v176, 0
    %v486 = vsel %vm439, %v177, 0
    %vm488 = vcmask 1043456
    %v490 = vsel %vm488, %v183, 0
    %492 = vmatprep.subr.mxu0 0.0
    %493 = vmatpush1.msra.mxu0 %v181
    %494 = vmatprep.subr.mxu0 0.0
    %495 = vmatpush1.msra.mxu0 %v182
    %496 = vmatprep.subr.mxu0 0.0
    %497 = vmatpush1.msra.mxu0 %v490
    %498 = vmatprep.subr.mxu0 0.0
    %499 = vmatpush1.msra.mxu0 0.0
    %500 = vmatprep.subr.mxu0 0.0
    %501 = vmatpush1.msra.mxu0 0.0
    %502 = vmatprep.subr.mxu0 0.0
    %503 = vmatpush1.msra.mxu0 0.0
    %504 = vmatprep.subr.mxu0 0.0
    %505 = vmatpush1.msra.mxu0 0.0
    %506 = vmatprep.subr.mxu0 0.0
    %507 = vmatpush1.msra.mxu0 0.0
    %508 = vmatprep.subr.mxu0 0.0
    %509 = vmatpush1.msra.mxu0 0.0
    %510 = vmatprep.subr.mxu0 0.0
    %511 = vmatpush1.msra.mxu0 0.0
    %512 = vmatprep.subr.mxu0 0.0
    %513 = vmatpush1.msra.mxu0 0.0
    %514 = vmatprep.subr.mxu0 0.0
    %515 = vmatpush1.msra.mxu0 0.0
    %516 = vmatprep.subr.mxu0 0.0
    %517 = vmatpush1.msra.mxu0 0.0
    %518 = vmatprep.subr.mxu0 0.0
    %519 = vmatpush1.msra.mxu0 0.0
    %520 = vmatprep.subr.mxu0 0.0
    %521 = vmatpush1.msra.mxu0 0.0
    %522 = vmatprep.subr.mxu0 0.0
    %523 = vmatpush1.msra.mxu0 0.0
    %524 = vmatprep.subr.mxu0 0.0
    %525 = vmatpush1.msra.mxu0 0.0
    %526 = vmatprep.subr.mxu0 0.0
    %527 = vmatpush1.msra.mxu0 0.0
    %528 = vmatprep.subr.mxu0 0.0
    %529 = vmatpush1.msra.mxu0 0.0
    %530 = vmatprep.subr.mxu0 0.0
    %531 = vmatpush1.msra.mxu0 0.0
    %532 = vmatprep.subr.mxu0 0.0
    %533 = vmatpush1.msra.mxu0 0.0
    %534 = vmatprep.subr.mxu0 0.0
    %535 = vmatpush1.msra.mxu0 0.0
    %536 = vmatprep.subr.mxu0 0.0
    %537 = vmatpush1.msra.mxu0 0.0
    %538 = vmatprep.subr.mxu0 0.0
    %539 = vmatpush1.msra.mxu0 0.0
    %540 = vmatprep.subr.mxu0 0.0
    %541 = vmatpush1.msra.mxu0 0.0
    %542 = vmatprep.subr.mxu0 0.0
    %543 = vmatpush1.msra.mxu0 0.0
    %544 = vmatprep.subr.mxu0 0.0
    %545 = vmatpush1.msra.mxu0 0.0
    %546 = vmatprep.subr.mxu0 0.0
    %547 = vmatpush1.msra.mxu0 0.0
    %548 = vmatprep.subr.mxu0 0.0
    %549 = vmatpush1.msra.mxu0 0.0
    %550 = vmatprep.subr.mxu0 0.0
    %551 = vmatpush1.msra.mxu0 0.0
    %552 = vmatprep.subr.mxu0 0.0
    %553 = vmatpush1.msra.mxu0 0.0
    %554 = vmatprep.subr.mxu0 0.0
    %555 = vmatpush1.msra.mxu0 0.0
    %556 = vmatprep.mubr.f32.mxu0 0.0
    %557 = vmatmul.mubr.f32.gmra.mrb[0].mxu0 %v441
    %v558 = vpop.f32.mrb[0].mxu0
    %v559 = vadd.f32 0.0, %v558
    %v560 = vpop.f32.mrb[0].mxu0
    %561 = vmatprep.mubr.f32.mxu0 0.0
    %562 = vmatmul.mubr.f32.gmra.mrb[0].mxu0 %v444
    %v563 = vpop.f32.mrb[0].mxu0
    %v564 = vadd.f32 0.0, %v563
    %v565 = vpop.f32.mrb[0].mxu0
    %566 = vmatprep.mubr.f32.mxu0 0.0
    %567 = vmatmul.mubr.f32.gmra.mrb[0].mxu0 %v447
    %v568 = vpop.f32.mrb[0].mxu0
    %v569 = vadd.f32 0.0, %v568
    %v570 = vpop.f32.mrb[0].mxu0
    %571 = vmatprep.mubr.f32.mxu0 0.0
    %572 = vmatmul.mubr.f32.gmra.mrb[0].mxu0 %v450
    %v573 = vpop.f32.mrb[0].mxu0
    %v574 = vadd.f32 0.0, %v573
    %v575 = vpop.f32.mrb[0].mxu0
    %576 = vmatprep.mubr.f32.mxu0 0.0
    %577 = vmatmul.mubr.f32.gmra.mrb[0].mxu0 %v453
    %v578 = vpop.f32.mrb[0].mxu0
    %v579 = vadd.f32 0.0, %v578
    %v580 = vpop.f32.mrb[0].mxu0
    %581 = vmatprep.mubr.f32.mxu0 0.0
    %582 = vmatmul.mubr.f32.gmra.mrb[0].mxu0 %v456
    %v583 = vpop.f32.mrb[0].mxu0
    %v584 = vadd.f32 0.0, %v583
    %v585 = vpop.f32.mrb[0].mxu0
    %586 = vmatprep.mubr.f32.mxu0 0.0
    %587 = vmatmul.mubr.f32.gmra.mrb[0].mxu0 %v459
    %v588 = vpop.f32.mrb[0].mxu0
    %v589 = vadd.f32 0.0, %v588
    %v590 = vpop.f32.mrb[0].mxu0
    %591 = vmatprep.mubr.f32.mxu0 0.0
    %592 = vmatmul.mubr.f32.gmra.mrb[0].mxu0 %v462
    %v593 = vpop.f32.mrb[0].mxu0
    %v594 = vadd.f32 0.0, %v593
    %v595 = vpop.f32.mrb[0].mxu0
    %596 = vmatprep.mubr.f32.mxu0 0.0
    %597 = vmatmul.mubr.f32.gmra.mrb[0].mxu0 %v465
    %v598 = vpop.f32.mrb[0].mxu0
    %v599 = vadd.f32 0.0, %v598
    %v600 = vpop.f32.mrb[0].mxu0
    %601 = vmatprep.mubr.f32.mxu0 0.0
    %602 = vmatmul.mubr.f32.gmra.mrb[0].mxu0 %v468
    %v603 = vpop.f32.mrb[0].mxu0
    %v604 = vadd.f32 0.0, %v603
    %v605 = vpop.f32.mrb[0].mxu0
    %606 = vmatprep.mubr.f32.mxu0 0.0
    %607 = vmatmul.mubr.f32.gmra.mrb[0].mxu0 %v471
    %v608 = vpop.f32.mrb[0].mxu0
    %v609 = vadd.f32 0.0, %v608
    %v610 = vpop.f32.mrb[0].mxu0
    %611 = vmatprep.mubr.f32.mxu0 0.0
    %612 = vmatmul.mubr.f32.gmra.mrb[0].mxu0 %v474
    %v613 = vpop.f32.mrb[0].mxu0
    %v614 = vadd.f32 0.0, %v613
    %v615 = vpop.f32.mrb[0].mxu0
    %616 = vmatprep.mubr.f32.mxu0 0.0
    %617 = vmatmul.mubr.f32.gmra.mrb[0].mxu0 %v477
    %v618 = vpop.f32.mrb[0].mxu0
    %v619 = vadd.f32 0.0, %v618
    %v620 = vpop.f32.mrb[0].mxu0
    %621 = vmatprep.mubr.f32.mxu0 0.0
    %622 = vmatmul.mubr.f32.gmra.mrb[0].mxu0 %v480
    %v623 = vpop.f32.mrb[0].mxu0
    %v624 = vadd.f32 0.0, %v623
    %v625 = vpop.f32.mrb[0].mxu0
    %626 = vmatprep.mubr.f32.mxu0 0.0
    %627 = vmatmul.mubr.f32.gmra.mrb[0].mxu0 %v483
    %v628 = vpop.f32.mrb[0].mxu0
    %v629 = vadd.f32 0.0, %v628
    %v630 = vpop.f32.mrb[0].mxu0
    %631 = vmatprep.mubr.f32.mxu0 0.0
    %632 = vmatmul.mubr.f32.gmra.mrb[0].mxu0 %v486
    %v633 = vpop.f32.mrb[0].mxu0
    %v634 = vadd.f32 0.0, %v633
    %v635 = vpop.f32.mrb[0].mxu0
    %636 = vdwg.mxu0
    %v638 = vlaneseq
    %v639 = vshrl.u32 %v638, 7
    %v640 = vsub.s32 0, %v639
    %v641 = vrot.slane %v184, %v640
    %v643 = vadd.f32 %v559, %v641
    %v644 = vadd.f32 %v564, %v641
    %v645 = vadd.f32 %v569, %v641
    %v646 = vadd.f32 %v574, %v641
    %v647 = vadd.f32 %v579, %v641
    %v648 = vadd.f32 %v584, %v641
    %v649 = vadd.f32 %v589, %v641
    %v650 = vadd.f32 %v594, %v641
    %v651 = vadd.f32 %v599, %v641
    %v652 = vadd.f32 %v604, %v641
    %v653 = vadd.f32 %v609, %v641
    %v654 = vadd.f32 %v614, %v641
    %v655 = vadd.f32 %v619, %v641
    %v656 = vadd.f32 %v624, %v641
    %v657 = vadd.f32 %v629, %v641
    %v658 = vadd.f32 %v634, %v641
    %vm659 = vcmp.ge.f32.partialorder %v643, 0.0
    %vm660 = vcmp.ge.f32.partialorder %v644, 0.0
    %vm661 = vcmp.ge.f32.partialorder %v645, 0.0
    %vm662 = vcmp.ge.f32.partialorder %v646, 0.0
    %vm663 = vcmp.ge.f32.partialorder %v647, 0.0
    %vm664 = vcmp.ge.f32.partialorder %v648, 0.0
    %vm665 = vcmp.ge.f32.partialorder %v649, 0.0
    %vm666 = vcmp.ge.f32.partialorder %v650, 0.0
    %vm667 = vcmp.ge.f32.partialorder %v651, 0.0
    %vm668 = vcmp.ge.f32.partialorder %v652, 0.0
    %vm669 = vcmp.ge.f32.partialorder %v653, 0.0
    %vm670 = vcmp.ge.f32.partialorder %v654, 0.0
    %vm671 = vcmp.ge.f32.partialorder %v655, 0.0
    %vm672 = vcmp.ge.f32.partialorder %v656, 0.0
    %vm673 = vcmp.ge.f32.partialorder %v657, 0.0
    %vm674 = vcmp.ge.f32.partialorder %v658, 0.0
    %v675 = vmul.f32 %v643, 0.01
    %v676 = vmul.f32 %v644, 0.01
    %v677 = vmul.f32 %v645, 0.01
    %v678 = vmul.f32 %v646, 0.01
    %v679 = vmul.f32 %v647, 0.01
    %v680 = vmul.f32 %v648, 0.01
    %v681 = vmul.f32 %v649, 0.01
    %v682 = vmul.f32 %v650, 0.01
    %v683 = vmul.f32 %v651, 0.01
    %v684 = vmul.f32 %v652, 0.01
    %v685 = vmul.f32 %v653, 0.01
    %v686 = vmul.f32 %v654, 0.01
    %v687 = vmul.f32 %v655, 0.01
    %v688 = vmul.f32 %v656, 0.01
    %v689 = vmul.f32 %v657, 0.01
    %v690 = vmul.f32 %v658, 0.01
    %v691 = vsel %vm659, %v643, %v675
    %v692 = vsel %vm660, %v644, %v676
    %v693 = vsel %vm661, %v645, %v677
    %v694 = vsel %vm662, %v646, %v678
    %v695 = vsel %vm663, %v647, %v679
    %v696 = vsel %vm664, %v648, %v680
    %v697 = vsel %vm665, %v649, %v681
    %v698 = vsel %vm666, %v650, %v682
    %v699 = vsel %vm667, %v651, %v683
    %v700 = vsel %vm668, %v652, %v684
    %v701 = vsel %vm669, %v653, %v685
    %v702 = vsel %vm670, %v654, %v686
    %v703 = vsel %vm671, %v655, %v687
    %v704 = vsel %vm672, %v656, %v688
    %v705 = vsel %vm673, %v657, %v689
    %v706 = vsel %vm674, %v658, %v690
    %v707 = vpack.c.bf16 %v564, %v559
    %v708 = vpack.c.bf16 %v574, %v569
    %v709 = vpack.c.bf16 %v584, %v579
    %v710 = vpack.c.bf16 %v594, %v589
    %v711 = vpack.c.bf16 %v604, %v599
    %v712 = vpack.c.bf16 %v614, %v609
    %v713 = vpack.c.bf16 %v624, %v619
    %v714 = vpack.c.bf16 %v634, %v629
    %715 = vxpose.xlu0.c.b16.start [1/8] %v258, 128
    %716 = vxpose.xlu0.c.b16.cont [2/8] %v259, 128
    %717 = vxpose.xlu0.c.b16.cont [3/8] %v260, 128
    %718 = vxpose.xlu0.c.b16.cont [4/8] %v261, 128
    %719 = vxpose.xlu0.c.b16.cont [5/8] %v262, 128
    %720 = vxpose.xlu0.c.b16.cont [6/8] %v263, 128
    %721 = vxpose.xlu0.c.b16.cont [7/8] %v264, 128
    %722 = vxpose.xlu0.c.b16.end [8/8] %v265, 128
    %v723 = vpop.trf.xlu0
    %v724 = vpop.trf.xlu0
    %v725 = vpop.trf.xlu0
    %v726 = vpop.trf.xlu0
    %v727 = vpop.trf.xlu0
    %v728 = vpop.trf.xlu0
    %v729 = vpop.trf.xlu0
    %v730 = vpop.trf.xlu0
    %731 = vmatprep.subr.bf16.mxu0 0
    %732 = vmatpush1.bf16.msra.mxu0 %v707
    %733 = vmatprep.subr.bf16.mxu0 0
    %734 = vmatpush1.bf16.msra.mxu0 %v708
    %735 = vmatprep.subr.bf16.mxu0 0
    %736 = vmatpush1.bf16.msra.mxu0 %v709
    %737 = vmatprep.subr.bf16.mxu0 0
    %738 = vmatpush1.bf16.msra.mxu0 %v710
    %739 = vmatprep.subr.bf16.mxu0 0
    %740 = vmatpush1.bf16.msra.mxu0 %v711
    %741 = vmatprep.subr.bf16.mxu0 0
    %742 = vmatpush1.bf16.msra.mxu0 %v712
    %743 = vmatprep.subr.bf16.mxu0 0
    %744 = vmatpush1.bf16.msra.mxu0 %v713
    %745 = vmatprep.subr.bf16.mxu0 0
    %746 = vmatpush1.bf16.msra.mxu0 %v714
    %747 = vmatprep.subr.bf16.mxu0 0
    %748 = vmatpush1.bf16.msra.mxu0 0
    %749 = vmatprep.subr.bf16.mxu0 0
    %750 = vmatpush1.bf16.msra.mxu0 0
    %751 = vmatprep.subr.bf16.mxu0 0
    %752 = vmatpush1.bf16.msra.mxu0 0
    %753 = vmatprep.subr.bf16.mxu0 0
    %754 = vmatpush1.bf16.msra.mxu0 0
    %755 = vmatprep.subr.bf16.mxu0 0
    %756 = vmatpush1.bf16.msra.mxu0 0
    %757 = vmatprep.subr.bf16.mxu0 0
    %758 = vmatpush1.bf16.msra.mxu0 0
    %759 = vmatprep.subr.bf16.mxu0 0
    %760 = vmatpush1.bf16.msra.mxu0 0
    %761 = vmatprep.subr.bf16.mxu0 0
    %762 = vmatpush1.bf16.msra.mxu0 0
    %763 = vmatprep.mubr.bf16.mxu0 0
    %764 = vmatmul.mubr.bf16.gmra.mrb[0].mxu0 %v723
    %v765 = vpop.f32.mrb[0].mxu0
    %v766 = vadd.f32 %v641, %v765
    %v767 = vpop.f32.mrb[0].mxu0
    %v768 = vpop.f32.mrb[0].mxu0
    %v769 = vadd.f32 %v641, %v768
    %v770 = vpop.f32.mrb[0].mxu0
    %771 = vmatprep.mubr.bf16.mxu0 0
    %772 = vmatmul.mubr.bf16.gmra.mrb[0].mxu0 %v724
    %v773 = vpop.f32.mrb[0].mxu0
    %v774 = vadd.f32 %v641, %v773
    %v775 = vpop.f32.mrb[0].mxu0
    %v776 = vpop.f32.mrb[0].mxu0
    %v777 = vadd.f32 %v641, %v776
    %v778 = vpop.f32.mrb[0].mxu0
    %779 = vmatprep.mubr.bf16.mxu0 0
    %780 = vmatmul.mubr.bf16.gmra.mrb[0].mxu0 %v725
    %v781 = vpop.f32.mrb[0].mxu0
    %v782 = vadd.f32 %v641, %v781
    %v783 = vpop.f32.mrb[0].mxu0
    %v784 = vpop.f32.mrb[0].mxu0
    %v785 = vadd.f32 %v641, %v784
    %v786 = vpop.f32.mrb[0].mxu0
    %787 = vmatprep.mubr.bf16.mxu0 0
    %788 = vmatmul.mubr.bf16.gmra.mrb[0].mxu0 %v726
    %v789 = vpop.f32.mrb[0].mxu0
    %v790 = vadd.f32 %v641, %v789
    %v791 = vpop.f32.mrb[0].mxu0
    %v792 = vpop.f32.mrb[0].mxu0
    %v793 = vadd.f32 %v641, %v792
    %v794 = vpop.f32.mrb[0].mxu0
    %795 = vmatprep.mubr.bf16.mxu0 0
    %796 = vmatmul.mubr.bf16.gmra.mrb[0].mxu0 %v727
    %v797 = vpop.f32.mrb[0].mxu0
    %v798 = vadd.f32 %v641, %v797
    %v799 = vpop.f32.mrb[0].mxu0
    %v800 = vpop.f32.mrb[0].mxu0
    %v801 = vadd.f32 %v641, %v800
    %v802 = vpop.f32.mrb[0].mxu0
    %803 = vmatprep.mubr.bf16.mxu0 0
    %804 = vmatmul.mubr.bf16.gmra.mrb[0].mxu0 %v728
    %v805 = vpop.f32.mrb[0].mxu0
    %v806 = vadd.f32 %v641, %v805
    %v807 = vpop.f32.mrb[0].mxu0
    %v808 = vpop.f32.mrb[0].mxu0
    %v809 = vadd.f32 %v641, %v808
    %v810 = vpop.f32.mrb[0].mxu0
    %811 = vmatprep.mubr.bf16.mxu0 0
    %812 = vmatmul.mubr.bf16.gmra.mrb[0].mxu0 %v729
    %v813 = vpop.f32.mrb[0].mxu0
    %v814 = vadd.f32 %v641, %v813
    %v815 = vpop.f32.mrb[0].mxu0
    %v816 = vpop.f32.mrb[0].mxu0
    %v817 = vadd.f32 %v641, %v816
    %v818 = vpop.f32.mrb[0].mxu0
    %819 = vmatprep.mubr.bf16.mxu0 0
    %820 = vmatmul.mubr.bf16.gmra.mrb[0].mxu0 %v730
    %v821 = vpop.f32.mrb[0].mxu0
    %v822 = vadd.f32 %v641, %v821
    %v823 = vpop.f32.mrb[0].mxu0
    %v824 = vpop.f32.mrb[0].mxu0
    %v825 = vadd.f32 %v641, %v824
    %v826 = vpop.f32.mrb[0].mxu0
    %827 = vdwg.mxu0
    %vm828 = vcmp.ge.f32.partialorder %v766, 0.0
    %vm829 = vcmp.ge.f32.partialorder %v769, 0.0
    %vm830 = vcmp.ge.f32.partialorder %v774, 0.0
    %vm831 = vcmp.ge.f32.partialorder %v777, 0.0
    %vm832 = vcmp.ge.f32.partialorder %v782, 0.0
    %vm833 = vcmp.ge.f32.partialorder %v785, 0.0
    %vm834 = vcmp.ge.f32.partialorder %v790, 0.0
    %vm835 = vcmp.ge.f32.partialorder %v793, 0.0
    %vm836 = vcmp.ge.f32.partialorder %v798, 0.0
    %vm837 = vcmp.ge.f32.partialorder %v801, 0.0
    %vm838 = vcmp.ge.f32.partialorder %v806, 0.0
    %vm839 = vcmp.ge.f32.partialorder %v809, 0.0
    %vm840 = vcmp.ge.f32.partialorder %v814, 0.0
    %vm841 = vcmp.ge.f32.partialorder %v817, 0.0
    %vm842 = vcmp.ge.f32.partialorder %v822, 0.0
    %vm843 = vcmp.ge.f32.partialorder %v825, 0.0
    %v844 = vmul.f32 %v766, 0.01
    %v845 = vmul.f32 %v769, 0.01
    %v846 = vmul.f32 %v774, 0.01
    %v847 = vmul.f32 %v777, 0.01
    %v848 = vmul.f32 %v782, 0.01
    %v849 = vmul.f32 %v785, 0.01
    %v850 = vmul.f32 %v790, 0.01
    %v851 = vmul.f32 %v793, 0.01
    %v852 = vmul.f32 %v798, 0.01
    %v853 = vmul.f32 %v801, 0.01
    %v854 = vmul.f32 %v806, 0.01
    %v855 = vmul.f32 %v809, 0.01
    %v856 = vmul.f32 %v814, 0.01
    %v857 = vmul.f32 %v817, 0.01
    %v858 = vmul.f32 %v822, 0.01
    %v859 = vmul.f32 %v825, 0.01
    %v860 = vsel %vm828, %v766, %v844
    %v861 = vsel %vm829, %v769, %v845
    %v862 = vsel %vm830, %v774, %v846
    %v863 = vsel %vm831, %v777, %v847
    %v864 = vsel %vm832, %v782, %v848
    %v865 = vsel %vm833, %v785, %v849
    %v866 = vsel %vm834, %v790, %v850
    %v867 = vsel %vm835, %v793, %v851
    %v868 = vsel %vm836, %v798, %v852
    %v869 = vsel %vm837, %v801, %v853
    %v870 = vsel %vm838, %v806, %v854
    %v871 = vsel %vm839, %v809, %v855
    %v872 = vsel %vm840, %v814, %v856
    %v873 = vsel %vm841, %v817, %v857
    %v874 = vsel %vm842, %v822, %v858
    %v875 = vsel %vm843, %v825, %v859
    %v876 = vpack.c.bf16 %v861, %v860
    %v877 = vpack.c.bf16 %v863, %v862
    %v878 = vpack.c.bf16 %v865, %v864
    %v879 = vpack.c.bf16 %v867, %v866
    %v880 = vpack.c.bf16 %v869, %v868
    %v881 = vpack.c.bf16 %v871, %v870
    %v882 = vpack.c.bf16 %v873, %v872
    %v883 = vpack.c.bf16 %v875, %v874
    %884 = vmatprep.subr.bf16.mxu0 0
    %885 = vmatpush1.bf16.msra.mxu0 %v876
    %886 = vmatprep.subr.bf16.mxu0 0
    %887 = vmatpush1.bf16.msra.mxu0 %v877
    %888 = vmatprep.subr.bf16.mxu0 0
    %889 = vmatpush1.bf16.msra.mxu0 %v878
    %890 = vmatprep.subr.bf16.mxu0 0
    %891 = vmatpush1.bf16.msra.mxu0 %v879
    %892 = vmatprep.subr.bf16.mxu0 0
    %893 = vmatpush1.bf16.msra.mxu0 %v880
    %894 = vmatprep.subr.bf16.mxu0 0
    %895 = vmatpush1.bf16.msra.mxu0 %v881
    %896 = vmatprep.subr.bf16.mxu0 0
    %897 = vmatpush1.bf16.msra.mxu0 %v882
    %898 = vmatprep.subr.bf16.mxu0 0
    %899 = vmatpush1.bf16.msra.mxu0 %v883
    %900 = vmatprep.subr.bf16.mxu0 0
    %901 = vmatpush1.bf16.msra.mxu0 0
    %902 = vmatprep.subr.bf16.mxu0 0
    %903 = vmatpush1.bf16.msra.mxu0 0
    %904 = vmatprep.subr.bf16.mxu0 0
    %905 = vmatpush1.bf16.msra.mxu0 0
    %906 = vmatprep.subr.bf16.mxu0 0
    %907 = vmatpush1.bf16.msra.mxu0 0
    %908 = vmatprep.subr.bf16.mxu0 0
    %909 = vmatpush1.bf16.msra.mxu0 0
    %910 = vmatprep.subr.bf16.mxu0 0
    %911 = vmatpush1.bf16.msra.mxu0 0
    %912 = vmatprep.subr.bf16.mxu0 0
    %913 = vmatpush1.bf16.msra.mxu0 0
    %914 = vmatprep.subr.bf16.mxu0 0
    %915 = vmatpush1.bf16.msra.mxu0 0
    %916 = vmatprep.mubr.bf16.mxu0 0
    %917 = vmatmul.mubr.bf16.gmra.mrb[0].mxu0 %v302
    %v918 = vpop.f32.mrb[0].mxu0
    %v919 = vadd.f32 0.0, %v918
    %v920 = vpop.f32.mrb[0].mxu0
    %v921 = vpop.f32.mrb[0].mxu0
    %v922 = vadd.f32 0.0, %v921
    %v923 = vpop.f32.mrb[0].mxu0
    %924 = vmatprep.mubr.bf16.mxu0 0
    %925 = vmatmul.mubr.bf16.gmra.mrb[0].mxu0 %v303
    %v926 = vpop.f32.mrb[0].mxu0
    %v927 = vadd.f32 0.0, %v926
    %v928 = vpop.f32.mrb[0].mxu0
    %v929 = vpop.f32.mrb[0].mxu0
    %v930 = vadd.f32 0.0, %v929
    %v931 = vpop.f32.mrb[0].mxu0
    %932 = vmatprep.mubr.bf16.mxu0 0
    %933 = vmatmul.mubr.bf16.gmra.mrb[0].mxu0 %v304
    %v934 = vpop.f32.mrb[0].mxu0
    %v935 = vadd.f32 0.0, %v934
    %v936 = vpop.f32.mrb[0].mxu0
    %v937 = vpop.f32.mrb[0].mxu0
    %v938 = vadd.f32 0.0, %v937
    %v939 = vpop.f32.mrb[0].mxu0
    %940 = vmatprep.mubr.bf16.mxu0 0
    %941 = vmatmul.mubr.bf16.gmra.mrb[0].mxu0 %v305
    %v942 = vpop.f32.mrb[0].mxu0
    %v943 = vadd.f32 0.0, %v942
    %v944 = vpop.f32.mrb[0].mxu0
    %v945 = vpop.f32.mrb[0].mxu0
    %v946 = vadd.f32 0.0, %v945
    %v947 = vpop.f32.mrb[0].mxu0
    %948 = vmatprep.mubr.bf16.mxu0 0
    %949 = vmatmul.mubr.bf16.gmra.mrb[0].mxu0 %v306
    %v950 = vpop.f32.mrb[0].mxu0
    %v951 = vadd.f32 0.0, %v950
    %v952 = vpop.f32.mrb[0].mxu0
    %v953 = vpop.f32.mrb[0].mxu0
    %v954 = vadd.f32 0.0, %v953
    %v955 = vpop.f32.mrb[0].mxu0
    %956 = vmatprep.mubr.bf16.mxu0 0
    %957 = vmatmul.mubr.bf16.gmra.mrb[0].mxu0 %v307
    %v958 = vpop.f32.mrb[0].mxu0
    %v959 = vadd.f32 0.0, %v958
    %v960 = vpop.f32.mrb[0].mxu0
    %v961 = vpop.f32.mrb[0].mxu0
    %v962 = vadd.f32 0.0, %v961
    %v963 = vpop.f32.mrb[0].mxu0
    %964 = vmatprep.mubr.bf16.mxu0 0
    %965 = vmatmul.mubr.bf16.gmra.mrb[0].mxu0 %v308
    %v966 = vpop.f32.mrb[0].mxu0
    %v967 = vadd.f32 0.0, %v966
    %v968 = vpop.f32.mrb[0].mxu0
    %v969 = vpop.f32.mrb[0].mxu0
    %v970 = vadd.f32 0.0, %v969
    %v971 = vpop.f32.mrb[0].mxu0
    %972 = vmatprep.mubr.bf16.mxu0 0
    %973 = vmatmul.mubr.bf16.gmra.mrb[0].mxu0 %v309
    %v974 = vpop.f32.mrb[0].mxu0
    %v975 = vadd.f32 0.0, %v974
    %v976 = vpop.f32.mrb[0].mxu0
    %v977 = vpop.f32.mrb[0].mxu0
    %v978 = vadd.f32 0.0, %v977
    %v979 = vpop.f32.mrb[0].mxu0
    %980 = vdwg.mxu0
    %982 = vset.pattern.permute.xlu0 0
    %983 = vperm.xlu0 %982, %v423
    %v984 = vpop.permute.xlu0 %983
    %987 = vset.pattern.permute.xlu0 0
    %988 = vperm.xlu0 %987, %v424
    %v989 = vpop.permute.xlu0 %988
    %992 = vset.pattern.permute.xlu0 0
    %993 = vperm.xlu0 %992, %v425
    %v994 = vpop.permute.xlu0 %993
    %997 = vset.pattern.permute.xlu0 0
    %998 = vperm.xlu0 %997, %v426
    %v999 = vpop.permute.xlu0 %998
    %1002 = vset.pattern.permute.xlu0 0
    %1003 = vperm.xlu0 %1002, %v427
    %v1004 = vpop.permute.xlu0 %1003
    %1007 = vset.pattern.permute.xlu0 0
    %1008 = vperm.xlu0 %1007, %v428
    %v1009 = vpop.permute.xlu0 %1008
    %1012 = vset.pattern.permute.xlu0 0
    %1013 = vperm.xlu0 %1012, %v429
    %v1014 = vpop.permute.xlu0 %1013
    %1017 = vset.pattern.permute.xlu0 0
    %1018 = vperm.xlu0 %1017, %v430
    %v1019 = vpop.permute.xlu0 %1018
    %1022 = vset.pattern.permute.xlu0 0
    %1023 = vperm.xlu0 %1022, %v431
    %v1024 = vpop.permute.xlu0 %1023
    %1027 = vset.pattern.permute.xlu0 0
    %1028 = vperm.xlu0 %1027, %v432
    %v1029 = vpop.permute.xlu0 %1028
    %1032 = vset.pattern.permute.xlu0 0
    %1033 = vperm.xlu0 %1032, %v433
    %v1034 = vpop.permute.xlu0 %1033
    %1037 = vset.pattern.permute.xlu0 0
    %1038 = vperm.xlu0 %1037, %v434
    %v1039 = vpop.permute.xlu0 %1038
    %1042 = vset.pattern.permute.xlu0 0
    %1043 = vperm.xlu0 %1042, %v435
    %v1044 = vpop.permute.xlu0 %1043
    %1047 = vset.pattern.permute.xlu0 0
    %1048 = vperm.xlu0 %1047, %v436
    %v1049 = vpop.permute.xlu0 %1048
    %1052 = vset.pattern.permute.xlu0 0
    %1053 = vperm.xlu0 %1052, %v437
    %v1054 = vpop.permute.xlu0 %1053
    %1057 = vset.pattern.permute.xlu0 0
    %1058 = vperm.xlu0 %1057, %v438
    %v1059 = vpop.permute.xlu0 %1058
    %v1061 = vmul.f32 %v919, %v984
    %v1062 = vmul.f32 %v922, %v989
    %v1063 = vmul.f32 %v927, %v994
    %v1064 = vmul.f32 %v930, %v999
    %v1065 = vmul.f32 %v935, %v1004
    %v1066 = vmul.f32 %v938, %v1009
    %v1067 = vmul.f32 %v943, %v1014
    %v1068 = vmul.f32 %v946, %v1019
    %v1069 = vmul.f32 %v951, %v1024
    %v1070 = vmul.f32 %v954, %v1029
    %v1071 = vmul.f32 %v959, %v1034
    %v1072 = vmul.f32 %v962, %v1039
    %v1073 = vmul.f32 %v967, %v1044
    %v1074 = vmul.f32 %v970, %v1049
    %v1075 = vmul.f32 %v975, %v1054
    %v1076 = vmul.f32 %v978, %v1059
    %v1077 = vadd.f32 %v1061, %v691
    %v1078 = vadd.f32 %v1062, %v692
    %v1079 = vadd.f32 %v1063, %v693
    %v1080 = vadd.f32 %v1064, %v694
    %v1081 = vadd.f32 %v1065, %v695
    %v1082 = vadd.f32 %v1066, %v696
    %v1083 = vadd.f32 %v1067, %v697
    %v1084 = vadd.f32 %v1068, %v698
    %v1085 = vadd.f32 %v1069, %v699
    %v1086 = vadd.f32 %v1070, %v700
    %v1087 = vadd.f32 %v1071, %v701
    %v1088 = vadd.f32 %v1072, %v702
    %v1089 = vadd.f32 %v1073, %v703
    %v1090 = vadd.f32 %v1074, %v704
    %v1091 = vadd.f32 %v1075, %v705
    %v1092 = vadd.f32 %v1076, %v706
    %vm1093 = vcmask 261120
    %v1095 = vsel %vm1093, %v1077, 0
    %v1098 = vsel %vm1093, %v1078, 0
    %v1101 = vsel %vm1093, %v1079, 0
    %v1104 = vsel %vm1093, %v1080, 0
    %v1107 = vsel %vm1093, %v1081, 0
    %v1110 = vsel %vm1093, %v1082, 0
    %v1113 = vsel %vm1093, %v1083, 0
    %v1116 = vsel %vm1093, %v1084, 0
    %v1119 = vsel %vm1093, %v1085, 0
    %v1122 = vsel %vm1093, %v1086, 0
    %v1125 = vsel %vm1093, %v1087, 0
    %v1128 = vsel %vm1093, %v1088, 0
    %v1131 = vsel %vm1093, %v1089, 0
    %v1134 = vsel %vm1093, %v1090, 0
    %v1137 = vsel %vm1093, %v1091, 0
    %v1140 = vsel %vm1093, %v1092, 0
    %1142 = vmatprep.subr.mxu0 0.0
    %1143 = vmatpush1.msra.mxu0 %v185
    %1144 = vmatprep.subr.mxu0 0.0
    %1145 = vmatpush1.msra.mxu0 %v186
    %1146 = vmatprep.subr.mxu0 0.0
    %1147 = vmatpush1.msra.mxu0 %v187
    %1148 = vmatprep.subr.mxu0 0.0
    %1149 = vmatpush1.msra.mxu0 %v188
    %1150 = vmatprep.subr.mxu0 0.0
    %1151 = vmatpush1.msra.mxu0 0.0
    %1152 = vmatprep.subr.mxu0 0.0
    %1153 = vmatpush1.msra.mxu0 0.0
    %1154 = vmatprep.subr.mxu0 0.0
    %1155 = vmatpush1.msra.mxu0 0.0
    %1156 = vmatprep.subr.mxu0 0.0
    %1157 = vmatpush1.msra.mxu0 0.0
    %1158 = vmatprep.subr.mxu0 0.0
    %1159 = vmatpush1.msra.mxu0 0.0
    %1160 = vmatprep.subr.mxu0 0.0
    %1161 = vmatpush1.msra.mxu0 0.0
    %1162 = vmatprep.subr.mxu0 0.0
    %1163 = vmatpush1.msra.mxu0 0.0
    %1164 = vmatprep.subr.mxu0 0.0
    %1165 = vmatpush1.msra.mxu0 0.0
    %1166 = vmatprep.subr.mxu0 0.0
    %1167 = vmatpush1.msra.mxu0 0.0
    %1168 = vmatprep.subr.mxu0 0.0
    %1169 = vmatpush1.msra.mxu0 0.0
    %1170 = vmatprep.subr.mxu0 0.0
    %1171 = vmatpush1.msra.mxu0 0.0
    %1172 = vmatprep.subr.mxu0 0.0
    %1173 = vmatpush1.msra.mxu0 0.0
    %1174 = vmatprep.subr.mxu0 0.0
    %1175 = vmatpush1.msra.mxu0 0.0
    %1176 = vmatprep.subr.mxu0 0.0
    %1177 = vmatpush1.msra.mxu0 0.0
    %1178 = vmatprep.subr.mxu0 0.0
    %1179 = vmatpush1.msra.mxu0 0.0
    %1180 = vmatprep.subr.mxu0 0.0
    %1181 = vmatpush1.msra.mxu0 0.0
    %1182 = vmatprep.subr.mxu0 0.0
    %1183 = vmatpush1.msra.mxu0 0.0
    %1184 = vmatprep.subr.mxu0 0.0
    %1185 = vmatpush1.msra.mxu0 0.0
    %1186 = vmatprep.subr.mxu0 0.0
    %1187 = vmatpush1.msra.mxu0 0.0
    %1188 = vmatprep.subr.mxu0 0.0
    %1189 = vmatpush1.msra.mxu0 0.0
    %1190 = vmatprep.subr.mxu0 0.0
    %1191 = vmatpush1.msra.mxu0 0.0
    %1192 = vmatprep.subr.mxu0 0.0
    %1193 = vmatpush1.msra.mxu0 0.0
    %1194 = vmatprep.subr.mxu0 0.0
    %1195 = vmatpush1.msra.mxu0 0.0
    %1196 = vmatprep.subr.mxu0 0.0
    %1197 = vmatpush1.msra.mxu0 0.0
    %1198 = vmatprep.subr.mxu0 0.0
    %1199 = vmatpush1.msra.mxu0 0.0
    %1200 = vmatprep.subr.mxu0 0.0
    %1201 = vmatpush1.msra.mxu0 0.0
    %1202 = vmatprep.subr.mxu0 0.0
    %1203 = vmatpush1.msra.mxu0 0.0
    %1204 = vmatprep.subr.mxu0 0.0
    %1205 = vmatpush1.msra.mxu0 0.0
    %1206 = vmatprep.mubr.f32.mxu0 0.0
    %1207 = vmatmul.mubr.f32.gmra.mrb[0].mxu0 %v1095
    %v1208 = vpop.f32.mrb[0].mxu0
    %v1209 = vadd.f32 0.0, %v1208
    %v1210 = vpop.f32.mrb[0].mxu0
    %1211 = vmatprep.mubr.f32.mxu0 0.0
    %1212 = vmatmul.mubr.f32.gmra.mrb[0].mxu0 %v1098
    %v1213 = vpop.f32.mrb[0].mxu0
    %v1214 = vadd.f32 0.0, %v1213
    %v1215 = vpop.f32.mrb[0].mxu0
    %1216 = vmatprep.mubr.f32.mxu0 0.0
    %1217 = vmatmul.mubr.f32.gmra.mrb[0].mxu0 %v1101
    %v1218 = vpop.f32.mrb[0].mxu0
    %v1219 = vadd.f32 0.0, %v1218
    %v1220 = vpop.f32.mrb[0].mxu0
    %1221 = vmatprep.mubr.f32.mxu0 0.0
    %1222 = vmatmul.mubr.f32.gmra.mrb[0].mxu0 %v1104
    %v1223 = vpop.f32.mrb[0].mxu0
    %v1224 = vadd.f32 0.0, %v1223
    %v1225 = vpop.f32.mrb[0].mxu0
    %1226 = vmatprep.mubr.f32.mxu0 0.0
    %1227 = vmatmul.mubr.f32.gmra.mrb[0].mxu0 %v1107
    %v1228 = vpop.f32.mrb[0].mxu0
    %v1229 = vadd.f32 0.0, %v1228
    %v1230 = vpop.f32.mrb[0].mxu0
    %1231 = vmatprep.mubr.f32.mxu0 0.0
    %1232 = vmatmul.mubr.f32.gmra.mrb[0].mxu0 %v1110
    %v1233 = vpop.f32.mrb[0].mxu0
    %v1234 = vadd.f32 0.0, %v1233
    %v1235 = vpop.f32.mrb[0].mxu0
    %1236 = vmatprep.mubr.f32.mxu0 0.0
    %1237 = vmatmul.mubr.f32.gmra.mrb[0].mxu0 %v1113
    %v1238 = vpop.f32.mrb[0].mxu0
    %v1239 = vadd.f32 0.0, %v1238
    %v1240 = vpop.f32.mrb[0].mxu0
    %1241 = vmatprep.mubr.f32.mxu0 0.0
    %1242 = vmatmul.mubr.f32.gmra.mrb[0].mxu0 %v1116
    %v1243 = vpop.f32.mrb[0].mxu0
    %v1244 = vadd.f32 0.0, %v1243
    %v1245 = vpop.f32.mrb[0].mxu0
    %1246 = vmatprep.mubr.f32.mxu0 0.0
    %1247 = vmatmul.mubr.f32.gmra.mrb[0].mxu0 %v1119
    %v1248 = vpop.f32.mrb[0].mxu0
    %v1249 = vadd.f32 0.0, %v1248
    %v1250 = vpop.f32.mrb[0].mxu0
    %1251 = vmatprep.mubr.f32.mxu0 0.0
    %1252 = vmatmul.mubr.f32.gmra.mrb[0].mxu0 %v1122
    %v1253 = vpop.f32.mrb[0].mxu0
    %v1254 = vadd.f32 0.0, %v1253
    %v1255 = vpop.f32.mrb[0].mxu0
    %1256 = vmatprep.mubr.f32.mxu0 0.0
    %1257 = vmatmul.mubr.f32.gmra.mrb[0].mxu0 %v1125
    %v1258 = vpop.f32.mrb[0].mxu0
    %v1259 = vadd.f32 0.0, %v1258
    %v1260 = vpop.f32.mrb[0].mxu0
    %1261 = vmatprep.mubr.f32.mxu0 0.0
    %1262 = vmatmul.mubr.f32.gmra.mrb[0].mxu0 %v1128
    %v1263 = vpop.f32.mrb[0].mxu0
    %v1264 = vadd.f32 0.0, %v1263
    %v1265 = vpop.f32.mrb[0].mxu0
    %1266 = vmatprep.mubr.f32.mxu0 0.0
    %1267 = vmatmul.mubr.f32.gmra.mrb[0].mxu0 %v1131
    %v1268 = vpop.f32.mrb[0].mxu0
    %v1269 = vadd.f32 0.0, %v1268
    %v1270 = vpop.f32.mrb[0].mxu0
    %1271 = vmatprep.mubr.f32.mxu0 0.0
    %1272 = vmatmul.mubr.f32.gmra.mrb[0].mxu0 %v1134
    %v1273 = vpop.f32.mrb[0].mxu0
    %v1274 = vadd.f32 0.0, %v1273
    %v1275 = vpop.f32.mrb[0].mxu0
    %1276 = vmatprep.mubr.f32.mxu0 0.0
    %1277 = vmatmul.mubr.f32.gmra.mrb[0].mxu0 %v1137
    %v1278 = vpop.f32.mrb[0].mxu0
    %v1279 = vadd.f32 0.0, %v1278
    %v1280 = vpop.f32.mrb[0].mxu0
    %1281 = vmatprep.mubr.f32.mxu0 0.0
    %1282 = vmatmul.mubr.f32.gmra.mrb[0].mxu0 %v1140
    %v1283 = vpop.f32.mrb[0].mxu0
    %v1284 = vadd.f32 0.0, %v1283
    %v1285 = vpop.f32.mrb[0].mxu0
    %1286 = vdwg.mxu0
    %v1288 = vlaneseq
    %v1289 = vshrl.u32 %v1288, 7
    %v1290 = vsub.s32 0, %v1289
    %v1291 = vrot.slane %v189, %v1290
    %v1293 = vadd.f32 %v1209, %v1291
    %v1294 = vadd.f32 %v1214, %v1291
    %v1295 = vadd.f32 %v1219, %v1291
    %v1296 = vadd.f32 %v1224, %v1291
    %v1297 = vadd.f32 %v1229, %v1291
    %v1298 = vadd.f32 %v1234, %v1291
    %v1299 = vadd.f32 %v1239, %v1291
    %v1300 = vadd.f32 %v1244, %v1291
    %v1301 = vadd.f32 %v1249, %v1291
    %v1302 = vadd.f32 %v1254, %v1291
    %v1303 = vadd.f32 %v1259, %v1291
    %v1304 = vadd.f32 %v1264, %v1291
    %v1305 = vadd.f32 %v1269, %v1291
    %v1306 = vadd.f32 %v1274, %v1291
    %v1307 = vadd.f32 %v1279, %v1291
    %v1308 = vadd.f32 %v1284, %v1291
    %vm1309 = vcmp.ge.f32.partialorder %v1293, 0.0
    %vm1310 = vcmp.ge.f32.partialorder %v1294, 0.0
    %vm1311 = vcmp.ge.f32.partialorder %v1295, 0.0
    %vm1312 = vcmp.ge.f32.partialorder %v1296, 0.0
    %vm1313 = vcmp.ge.f32.partialorder %v1297, 0.0
    %vm1314 = vcmp.ge.f32.partialorder %v1298, 0.0
    %vm1315 = vcmp.ge.f32.partialorder %v1299, 0.0
    %vm1316 = vcmp.ge.f32.partialorder %v1300, 0.0
    %vm1317 = vcmp.ge.f32.partialorder %v1301, 0.0
    %vm1318 = vcmp.ge.f32.partialorder %v1302, 0.0
    %vm1319 = vcmp.ge.f32.partialorder %v1303, 0.0
    %vm1320 = vcmp.ge.f32.partialorder %v1304, 0.0
    %vm1321 = vcmp.ge.f32.partialorder %v1305, 0.0
    %vm1322 = vcmp.ge.f32.partialorder %v1306, 0.0
    %vm1323 = vcmp.ge.f32.partialorder %v1307, 0.0
    %vm1324 = vcmp.ge.f32.partialorder %v1308, 0.0
    %v1325 = vmul.f32 %v1293, 0.01
    %v1326 = vmul.f32 %v1294, 0.01
    %v1327 = vmul.f32 %v1295, 0.01
    %v1328 = vmul.f32 %v1296, 0.01
    %v1329 = vmul.f32 %v1297, 0.01
    %v1330 = vmul.f32 %v1298, 0.01
    %v1331 = vmul.f32 %v1299, 0.01
    %v1332 = vmul.f32 %v1300, 0.01
    %v1333 = vmul.f32 %v1301, 0.01
    %v1334 = vmul.f32 %v1302, 0.01
    %v1335 = vmul.f32 %v1303, 0.01
    %v1336 = vmul.f32 %v1304, 0.01
    %v1337 = vmul.f32 %v1305, 0.01
    %v1338 = vmul.f32 %v1306, 0.01
    %v1339 = vmul.f32 %v1307, 0.01
    %v1340 = vmul.f32 %v1308, 0.01
    %v1341 = vsel %vm1309, %v1293, %v1325
    %v1342 = vsel %vm1310, %v1294, %v1326
    %v1343 = vsel %vm1311, %v1295, %v1327
    %v1344 = vsel %vm1312, %v1296, %v1328
    %v1345 = vsel %vm1313, %v1297, %v1329
    %v1346 = vsel %vm1314, %v1298, %v1330
    %v1347 = vsel %vm1315, %v1299, %v1331
    %v1348 = vsel %vm1316, %v1300, %v1332
    %v1349 = vsel %vm1317, %v1301, %v1333
    %v1350 = vsel %vm1318, %v1302, %v1334
    %v1351 = vsel %vm1319, %v1303, %v1335
    %v1352 = vsel %vm1320, %v1304, %v1336
    %v1353 = vsel %vm1321, %v1305, %v1337
    %v1354 = vsel %vm1322, %v1306, %v1338
    %v1355 = vsel %vm1323, %v1307, %v1339
    %v1356 = vsel %vm1324, %v1308, %v1340
    %v1357 = vpack.c.bf16 %v1214, %v1209
    %v1358 = vpack.c.bf16 %v1224, %v1219
    %v1359 = vpack.c.bf16 %v1234, %v1229
    %v1360 = vpack.c.bf16 %v1244, %v1239
    %v1361 = vpack.c.bf16 %v1254, %v1249
    %v1362 = vpack.c.bf16 %v1264, %v1259
    %v1363 = vpack.c.bf16 %v1274, %v1269
    %v1364 = vpack.c.bf16 %v1284, %v1279
    %1365 = vmatprep.subr.bf16.mxu0 0
    %1366 = vmatpush1.bf16.msra.mxu0 %v1357
    %1367 = vmatprep.subr.bf16.mxu0 0
    %1368 = vmatpush1.bf16.msra.mxu0 %v1358
    %1369 = vmatprep.subr.bf16.mxu0 0
    %1370 = vmatpush1.bf16.msra.mxu0 %v1359
    %1371 = vmatprep.subr.bf16.mxu0 0
    %1372 = vmatpush1.bf16.msra.mxu0 %v1360
    %1373 = vmatprep.subr.bf16.mxu0 0
    %1374 = vmatpush1.bf16.msra.mxu0 %v1361
    %1375 = vmatprep.subr.bf16.mxu0 0
    %1376 = vmatpush1.bf16.msra.mxu0 %v1362
    %1377 = vmatprep.subr.bf16.mxu0 0
    %1378 = vmatpush1.bf16.msra.mxu0 %v1363
    %1379 = vmatprep.subr.bf16.mxu0 0
    %1380 = vmatpush1.bf16.msra.mxu0 %v1364
    %1381 = vmatprep.subr.bf16.mxu0 0
    %1382 = vmatpush1.bf16.msra.mxu0 0
    %1383 = vmatprep.subr.bf16.mxu0 0
    %1384 = vmatpush1.bf16.msra.mxu0 0
    %1385 = vmatprep.subr.bf16.mxu0 0
    %1386 = vmatpush1.bf16.msra.mxu0 0
    %1387 = vmatprep.subr.bf16.mxu0 0
    %1388 = vmatpush1.bf16.msra.mxu0 0
    %1389 = vmatprep.subr.bf16.mxu0 0
    %1390 = vmatpush1.bf16.msra.mxu0 0
    %1391 = vmatprep.subr.bf16.mxu0 0
    %1392 = vmatpush1.bf16.msra.mxu0 0
    %1393 = vmatprep.subr.bf16.mxu0 0
    %1394 = vmatpush1.bf16.msra.mxu0 0
    %1395 = vmatprep.subr.bf16.mxu0 0
    %1396 = vmatpush1.bf16.msra.mxu0 0
    %1397 = vmatprep.mubr.bf16.mxu0 0
    %1398 = vmatmul.mubr.bf16.gmra.mrb[0].mxu0 %v723
    %v1399 = vpop.f32.mrb[0].mxu0
    %v1400 = vadd.f32 %v1291, %v1399
    %v1401 = vpop.f32.mrb[0].mxu0
    %v1402 = vpop.f32.mrb[0].mxu0
    %v1403 = vadd.f32 %v1291, %v1402
    %v1404 = vpop.f32.mrb[0].mxu0
    %1405 = vmatprep.mubr.bf16.mxu0 0
    %1406 = vmatmul.mubr.bf16.gmra.mrb[0].mxu0 %v724
    %v1407 = vpop.f32.mrb[0].mxu0
    %v1408 = vadd.f32 %v1291, %v1407
    %v1409 = vpop.f32.mrb[0].mxu0
    %v1410 = vpop.f32.mrb[0].mxu0
    %v1411 = vadd.f32 %v1291, %v1410
    %v1412 = vpop.f32.mrb[0].mxu0
    %1413 = vmatprep.mubr.bf16.mxu0 0
    %1414 = vmatmul.mubr.bf16.gmra.mrb[0].mxu0 %v725
    %v1415 = vpop.f32.mrb[0].mxu0
    %v1416 = vadd.f32 %v1291, %v1415
    %v1417 = vpop.f32.mrb[0].mxu0
    %v1418 = vpop.f32.mrb[0].mxu0
    %v1419 = vadd.f32 %v1291, %v1418
    %v1420 = vpop.f32.mrb[0].mxu0
    %1421 = vmatprep.mubr.bf16.mxu0 0
    %1422 = vmatmul.mubr.bf16.gmra.mrb[0].mxu0 %v726
    %v1423 = vpop.f32.mrb[0].mxu0
    %v1424 = vadd.f32 %v1291, %v1423
    %v1425 = vpop.f32.mrb[0].mxu0
    %v1426 = vpop.f32.mrb[0].mxu0
    %v1427 = vadd.f32 %v1291, %v1426
    %v1428 = vpop.f32.mrb[0].mxu0
    %1429 = vmatprep.mubr.bf16.mxu0 0
    %1430 = vmatmul.mubr.bf16.gmra.mrb[0].mxu0 %v727
    %v1431 = vpop.f32.mrb[0].mxu0
    %v1432 = vadd.f32 %v1291, %v1431
    %v1433 = vpop.f32.mrb[0].mxu0
    %v1434 = vpop.f32.mrb[0].mxu0
    %v1435 = vadd.f32 %v1291, %v1434
    %v1436 = vpop.f32.mrb[0].mxu0
    %1437 = vmatprep.mubr.bf16.mxu0 0
    %1438 = vmatmul.mubr.bf16.gmra.mrb[0].mxu0 %v728
    %v1439 = vpop.f32.mrb[0].mxu0
    %v1440 = vadd.f32 %v1291, %v1439
    %v1441 = vpop.f32.mrb[0].mxu0
    %v1442 = vpop.f32.mrb[0].mxu0
    %v1443 = vadd.f32 %v1291, %v1442
    %v1444 = vpop.f32.mrb[0].mxu0
    %1445 = vmatprep.mubr.bf16.mxu0 0
    %1446 = vmatmul.mubr.bf16.gmra.mrb[0].mxu0 %v729
    %v1447 = vpop.f32.mrb[0].mxu0
    %v1448 = vadd.f32 %v1291, %v1447
    %v1449 = vpop.f32.mrb[0].mxu0
    %v1450 = vpop.f32.mrb[0].mxu0
    %v1451 = vadd.f32 %v1291, %v1450
    %v1452 = vpop.f32.mrb[0].mxu0
    %1453 = vmatprep.mubr.bf16.mxu0 0
    %1454 = vmatmul.mubr.bf16.gmra.mrb[0].mxu0 %v730
    %v1455 = vpop.f32.mrb[0].mxu0
    %v1456 = vadd.f32 %v1291, %v1455
    %v1457 = vpop.f32.mrb[0].mxu0
    %v1458 = vpop.f32.mrb[0].mxu0
    %v1459 = vadd.f32 %v1291, %v1458
    %v1460 = vpop.f32.mrb[0].mxu0
    %1461 = vdwg.mxu0
    %vm1462 = vcmp.ge.f32.partialorder %v1400, 0.0
    %vm1463 = vcmp.ge.f32.partialorder %v1403, 0.0
    %vm1464 = vcmp.ge.f32.partialorder %v1408, 0.0
    %vm1465 = vcmp.ge.f32.partialorder %v1411, 0.0
    %vm1466 = vcmp.ge.f32.partialorder %v1416, 0.0
    %vm1467 = vcmp.ge.f32.partialorder %v1419, 0.0
    %vm1468 = vcmp.ge.f32.partialorder %v1424, 0.0
    %vm1469 = vcmp.ge.f32.partialorder %v1427, 0.0
    %vm1470 = vcmp.ge.f32.partialorder %v1432, 0.0
    %vm1471 = vcmp.ge.f32.partialorder %v1435, 0.0
    %vm1472 = vcmp.ge.f32.partialorder %v1440, 0.0
    %vm1473 = vcmp.ge.f32.partialorder %v1443, 0.0
    %vm1474 = vcmp.ge.f32.partialorder %v1448, 0.0
    %vm1475 = vcmp.ge.f32.partialorder %v1451, 0.0
    %vm1476 = vcmp.ge.f32.partialorder %v1456, 0.0
    %vm1477 = vcmp.ge.f32.partialorder %v1459, 0.0
    %v1478 = vmul.f32 %v1400, 0.01
    %v1479 = vmul.f32 %v1403, 0.01
    %v1480 = vmul.f32 %v1408, 0.01
    %v1481 = vmul.f32 %v1411, 0.01
    %v1482 = vmul.f32 %v1416, 0.01
    %v1483 = vmul.f32 %v1419, 0.01
    %v1484 = vmul.f32 %v1424, 0.01
    %v1485 = vmul.f32 %v1427, 0.01
    %v1486 = vmul.f32 %v1432, 0.01
    %v1487 = vmul.f32 %v1435, 0.01
    %v1488 = vmul.f32 %v1440, 0.01
    %v1489 = vmul.f32 %v1443, 0.01
    %v1490 = vmul.f32 %v1448, 0.01
    %v1491 = vmul.f32 %v1451, 0.01
    %v1492 = vmul.f32 %v1456, 0.01
    %v1493 = vmul.f32 %v1459, 0.01
    %v1494 = vsel %vm1462, %v1400, %v1478
    %v1495 = vsel %vm1463, %v1403, %v1479
    %v1496 = vsel %vm1464, %v1408, %v1480
    %v1497 = vsel %vm1465, %v1411, %v1481
    %v1498 = vsel %vm1466, %v1416, %v1482
    %v1499 = vsel %vm1467, %v1419, %v1483
    %v1500 = vsel %vm1468, %v1424, %v1484
    %v1501 = vsel %vm1469, %v1427, %v1485
    %v1502 = vsel %vm1470, %v1432, %v1486
    %v1503 = vsel %vm1471, %v1435, %v1487
    %v1504 = vsel %vm1472, %v1440, %v1488
    %v1505 = vsel %vm1473, %v1443, %v1489
    %v1506 = vsel %vm1474, %v1448, %v1490
    %v1507 = vsel %vm1475, %v1451, %v1491
    %v1508 = vsel %vm1476, %v1456, %v1492
    %v1509 = vsel %vm1477, %v1459, %v1493
    %v1510 = vpack.c.bf16 %v1495, %v1494
    %v1511 = vpack.c.bf16 %v1497, %v1496
    %v1512 = vpack.c.bf16 %v1499, %v1498
    %v1513 = vpack.c.bf16 %v1501, %v1500
    %v1514 = vpack.c.bf16 %v1503, %v1502
    %v1515 = vpack.c.bf16 %v1505, %v1504
    %v1516 = vpack.c.bf16 %v1507, %v1506
    %v1517 = vpack.c.bf16 %v1509, %v1508
    %1518 = vmatprep.subr.bf16.mxu0 0
    %1519 = vmatpush1.bf16.msra.mxu0 %v1510
    %1520 = vmatprep.subr.bf16.mxu0 0
    %1521 = vmatpush1.bf16.msra.mxu0 %v1511
    %1522 = vmatprep.subr.bf16.mxu0 0
    %1523 = vmatpush1.bf16.msra.mxu0 %v1512
    %1524 = vmatprep.subr.bf16.mxu0 0
    %1525 = vmatpush1.bf16.msra.mxu0 %v1513
    %1526 = vmatprep.subr.bf16.mxu0 0
    %1527 = vmatpush1.bf16.msra.mxu0 %v1514
    %1528 = vmatprep.subr.bf16.mxu0 0
    %1529 = vmatpush1.bf16.msra.mxu0 %v1515
    %1530 = vmatprep.subr.bf16.mxu0 0
    %1531 = vmatpush1.bf16.msra.mxu0 %v1516
    %1532 = vmatprep.subr.bf16.mxu0 0
    %1533 = vmatpush1.bf16.msra.mxu0 %v1517
    %1534 = vmatprep.subr.bf16.mxu0 0
    %1535 = vmatpush1.bf16.msra.mxu0 0
    %1536 = vmatprep.subr.bf16.mxu0 0
    %1537 = vmatpush1.bf16.msra.mxu0 0
    %1538 = vmatprep.subr.bf16.mxu0 0
    %1539 = vmatpush1.bf16.msra.mxu0 0
    %1540 = vmatprep.subr.bf16.mxu0 0
    %1541 = vmatpush1.bf16.msra.mxu0 0
    %1542 = vmatprep.subr.bf16.mxu0 0
    %1543 = vmatpush1.bf16.msra.mxu0 0
    %1544 = vmatprep.subr.bf16.mxu0 0
    %1545 = vmatpush1.bf16.msra.mxu0 0
    %1546 = vmatprep.subr.bf16.mxu0 0
    %1547 = vmatpush1.bf16.msra.mxu0 0
    %1548 = vmatprep.subr.bf16.mxu0 0
    %1549 = vmatpush1.bf16.msra.mxu0 0
    %1550 = vmatprep.mubr.bf16.mxu0 0
    %1551 = vmatmul.mubr.bf16.gmra.mrb[0].mxu0 %v302
    %v1552 = vpop.f32.mrb[0].mxu0
    %v1553 = vadd.f32 0.0, %v1552
    %v1554 = vpop.f32.mrb[0].mxu0
    %v1555 = vpop.f32.mrb[0].mxu0
    %v1556 = vadd.f32 0.0, %v1555
    %v1557 = vpop.f32.mrb[0].mxu0
    %1558 = vmatprep.mubr.bf16.mxu0 0
    %1559 = vmatmul.mubr.bf16.gmra.mrb[0].mxu0 %v303
    %v1560 = vpop.f32.mrb[0].mxu0
    %v1561 = vadd.f32 0.0, %v1560
    %v1562 = vpop.f32.mrb[0].mxu0
    %v1563 = vpop.f32.mrb[0].mxu0
    %v1564 = vadd.f32 0.0, %v1563
    %v1565 = vpop.f32.mrb[0].mxu0
    %1566 = vmatprep.mubr.bf16.mxu0 0
    %1567 = vmatmul.mubr.bf16.gmra.mrb[0].mxu0 %v304
    %v1568 = vpop.f32.mrb[0].mxu0
    %v1569 = vadd.f32 0.0, %v1568
    %v1570 = vpop.f32.mrb[0].mxu0
    %v1571 = vpop.f32.mrb[0].mxu0
    %v1572 = vadd.f32 0.0, %v1571
    %v1573 = vpop.f32.mrb[0].mxu0
    %1574 = vmatprep.mubr.bf16.mxu0 0
    %1575 = vmatmul.mubr.bf16.gmra.mrb[0].mxu0 %v305
    %v1576 = vpop.f32.mrb[0].mxu0
    %v1577 = vadd.f32 0.0, %v1576
    %v1578 = vpop.f32.mrb[0].mxu0
    %v1579 = vpop.f32.mrb[0].mxu0
    %v1580 = vadd.f32 0.0, %v1579
    %v1581 = vpop.f32.mrb[0].mxu0
    %1582 = vmatprep.mubr.bf16.mxu0 0
    %1583 = vmatmul.mubr.bf16.gmra.mrb[0].mxu0 %v306
    %v1584 = vpop.f32.mrb[0].mxu0
    %v1585 = vadd.f32 0.0, %v1584
    %v1586 = vpop.f32.mrb[0].mxu0
    %v1587 = vpop.f32.mrb[0].mxu0
    %v1588 = vadd.f32 0.0, %v1587
    %v1589 = vpop.f32.mrb[0].mxu0
    %1590 = vmatprep.mubr.bf16.mxu0 0
    %1591 = vmatmul.mubr.bf16.gmra.mrb[0].mxu0 %v307
    %v1592 = vpop.f32.mrb[0].mxu0
    %v1593 = vadd.f32 0.0, %v1592
    %v1594 = vpop.f32.mrb[0].mxu0
    %v1595 = vpop.f32.mrb[0].mxu0
    %v1596 = vadd.f32 0.0, %v1595
    %v1597 = vpop.f32.mrb[0].mxu0
    %1598 = vmatprep.mubr.bf16.mxu0 0
    %1599 = vmatmul.mubr.bf16.gmra.mrb[0].mxu0 %v308
    %v1600 = vpop.f32.mrb[0].mxu0
    %v1601 = vadd.f32 0.0, %v1600
    %v1602 = vpop.f32.mrb[0].mxu0
    %v1603 = vpop.f32.mrb[0].mxu0
    %v1604 = vadd.f32 0.0, %v1603
    %v1605 = vpop.f32.mrb[0].mxu0
    %1606 = vmatprep.mubr.bf16.mxu0 0
    %1607 = vmatmul.mubr.bf16.gmra.mrb[0].mxu0 %v309
    %v1608 = vpop.f32.mrb[0].mxu0
    %v1609 = vadd.f32 0.0, %v1608
    %v1610 = vpop.f32.mrb[0].mxu0
    %v1611 = vpop.f32.mrb[0].mxu0
    %v1612 = vadd.f32 0.0, %v1611
    %v1613 = vpop.f32.mrb[0].mxu0
    %1614 = vdwg.mxu0
    %v1615 = vmul.f32 %v1553, %v984
    %v1616 = vmul.f32 %v1556, %v989
    %v1617 = vmul.f32 %v1561, %v994
    %v1618 = vmul.f32 %v1564, %v999
    %v1619 = vmul.f32 %v1569, %v1004
    %v1620 = vmul.f32 %v1572, %v1009
    %v1621 = vmul.f32 %v1577, %v1014
    %v1622 = vmul.f32 %v1580, %v1019
    %v1623 = vmul.f32 %v1585, %v1024
    %v1624 = vmul.f32 %v1588, %v1029
    %v1625 = vmul.f32 %v1593, %v1034
    %v1626 = vmul.f32 %v1596, %v1039
    %v1627 = vmul.f32 %v1601, %v1044
    %v1628 = vmul.f32 %v1604, %v1049
    %v1629 = vmul.f32 %v1609, %v1054
    %v1630 = vmul.f32 %v1612, %v1059
    %v1631 = vadd.f32 %v1615, %v1341
    %v1632 = vadd.f32 %v1616, %v1342
    %v1633 = vadd.f32 %v1617, %v1343
    %v1634 = vadd.f32 %v1618, %v1344
    %v1635 = vadd.f32 %v1619, %v1345
    %v1636 = vadd.f32 %v1620, %v1346
    %v1637 = vadd.f32 %v1621, %v1347
    %v1638 = vadd.f32 %v1622, %v1348
    %v1639 = vadd.f32 %v1623, %v1349
    %v1640 = vadd.f32 %v1624, %v1350
    %v1641 = vadd.f32 %v1625, %v1351
    %v1642 = vadd.f32 %v1626, %v1352
    %v1643 = vadd.f32 %v1627, %v1353
    %v1644 = vadd.f32 %v1628, %v1354
    %v1645 = vadd.f32 %v1629, %v1355
    %v1646 = vadd.f32 %v1630, %v1356
    %v1647 = vlaneseq
    %v1648 = vand.u32 %v1647, 127
    %vm1649 = vcmp.lt.s32.totalorder %v1648, 8
    %v1650 = vsel %vm1649, 1, 0
    %v1651 = vcvt.s32.f32 %v1650
    %v1652 = vmul.f32 %v1651, 0.125
    %1653 = vmatprep.subr.mxu0 0.0
    %1654 = vmatpush1.msra.mxu0 %v1631
    %1655 = vmatprep.subr.mxu0 0.0
    %1656 = vmatpush1.msra.mxu0 %v1632
    %1657 = vmatprep.subr.mxu0 0.0
    %1658 = vmatpush1.msra.mxu0 %v1633
    %1659 = vmatprep.subr.mxu0 0.0
    %1660 = vmatpush1.msra.mxu0 %v1634
    %1661 = vmatprep.subr.mxu0 0.0
    %1662 = vmatpush1.msra.mxu0 %v1635
    %1663 = vmatprep.subr.mxu0 0.0
    %1664 = vmatpush1.msra.mxu0 %v1636
    %1665 = vmatprep.subr.mxu0 0.0
    %1666 = vmatpush1.msra.mxu0 %v1637
    %1667 = vmatprep.subr.mxu0 0.0
    %1668 = vmatpush1.msra.mxu0 %v1638
    %1669 = vmatprep.subr.mxu0 0.0
    %1670 = vmatpush1.msra.mxu0 %v1639
    %1671 = vmatprep.subr.mxu0 0.0
    %1672 = vmatpush1.msra.mxu0 %v1640
    %1673 = vmatprep.subr.mxu0 0.0
    %1674 = vmatpush1.msra.mxu0 %v1641
    %1675 = vmatprep.subr.mxu0 0.0
    %1676 = vmatpush1.msra.mxu0 %v1642
    %1677 = vmatprep.subr.mxu0 0.0
    %1678 = vmatpush1.msra.mxu0 %v1643
    %1679 = vmatprep.subr.mxu0 0.0
    %1680 = vmatpush1.msra.mxu0 %v1644
    %1681 = vmatprep.subr.mxu0 0.0
    %1682 = vmatpush1.msra.mxu0 %v1645
    %1683 = vmatprep.subr.mxu0 0.0
    %1684 = vmatpush1.msra.mxu0 %v1646
    %1685 = vmatprep.subr.mxu0 0.0
    %1686 = vmatpush1.msra.mxu0 0.0
    %1687 = vmatprep.subr.mxu0 0.0
    %1688 = vmatpush1.msra.mxu0 0.0
    %1689 = vmatprep.subr.mxu0 0.0
    %1690 = vmatpush1.msra.mxu0 0.0
    %1691 = vmatprep.subr.mxu0 0.0
    %1692 = vmatpush1.msra.mxu0 0.0
    %1693 = vmatprep.subr.mxu0 0.0
    %1694 = vmatpush1.msra.mxu0 0.0
    %1695 = vmatprep.subr.mxu0 0.0
    %1696 = vmatpush1.msra.mxu0 0.0
    %1697 = vmatprep.subr.mxu0 0.0
    %1698 = vmatpush1.msra.mxu0 0.0
    %1699 = vmatprep.subr.mxu0 0.0
    %1700 = vmatpush1.msra.mxu0 0.0
    %1701 = vmatprep.subr.mxu0 0.0
    %1702 = vmatpush1.msra.mxu0 0.0
    %1703 = vmatprep.subr.mxu0 0.0
    %1704 = vmatpush1.msra.mxu0 0.0
    %1705 = vmatprep.subr.mxu0 0.0
    %1706 = vmatpush1.msra.mxu0 0.0
    %1707 = vmatprep.subr.mxu0 0.0
    %1708 = vmatpush1.msra.mxu0 0.0
    %1709 = vmatprep.subr.mxu0 0.0
    %1710 = vmatpush1.msra.mxu0 0.0
    %1711 = vmatprep.subr.mxu0 0.0
    %1712 = vmatpush1.msra.mxu0 0.0
    %1713 = vmatprep.subr.mxu0 0.0
    %1714 = vmatpush1.msra.mxu0 0.0
    %1715 = vmatprep.subr.mxu0 0.0
    %1716 = vmatpush1.msra.mxu0 0.0
    %1717 = vmatprep.mubr.f32.mxu0 0.0
    %1718 = vmatmul.mubr.f32.gmra.mrb[0].mxu0 %v1652
    %v1719 = vpop.f32.mrb[0].mxu0
    %v1720 = vadd.f32 0.0, %v1719
    %v1721 = vpop.f32.mrb[0].mxu0
    %1722 = vdwg.mxu0
    %vm1723 = vcmask 523264
    %v1725 = vsel %vm1723, %v1720, 0
    %1727 = vmatprep.subr.mxu0 0.0
    %1728 = vmatpush1.msra.mxu0 %v190
    %1729 = vmatprep.subr.mxu0 0.0
    %1730 = vmatpush1.msra.mxu0 %v191
    %1731 = vmatprep.subr.mxu0 0.0
    %1732 = vmatpush1.msra.mxu0 %v192
    %1733 = vmatprep.subr.mxu0 0.0
    %1734 = vmatpush1.msra.mxu0 %v193
    %1735 = vmatprep.subr.mxu0 0.0
    %1736 = vmatpush1.msra.mxu0 %v194
    %1737 = vmatprep.subr.mxu0 0.0
    %1738 = vmatpush1.msra.mxu0 %v195
    %1739 = vmatprep.subr.mxu0 0.0
    %1740 = vmatpush1.msra.mxu0 %v196
    %1741 = vmatprep.subr.mxu0 0.0
    %1742 = vmatpush1.msra.mxu0 %v197
    %1743 = vmatprep.subr.mxu0 0.0
    %1744 = vmatpush1.msra.mxu0 0.0
    %1745 = vmatprep.subr.mxu0 0.0
    %1746 = vmatpush1.msra.mxu0 0.0
    %1747 = vmatprep.subr.mxu0 0.0
    %1748 = vmatpush1.msra.mxu0 0.0
    %1749 = vmatprep.subr.mxu0 0.0
    %1750 = vmatpush1.msra.mxu0 0.0
    %1751 = vmatprep.subr.mxu0 0.0
    %1752 = vmatpush1.msra.mxu0 0.0
    %1753 = vmatprep.subr.mxu0 0.0
    %1754 = vmatpush1.msra.mxu0 0.0
    %1755 = vmatprep.subr.mxu0 0.0
    %1756 = vmatpush1.msra.mxu0 0.0
    %1757 = vmatprep.subr.mxu0 0.0
    %1758 = vmatpush1.msra.mxu0 0.0
    %1759 = vmatprep.subr.mxu0 0.0
    %1760 = vmatpush1.msra.mxu0 0.0
    %1761 = vmatprep.subr.mxu0 0.0
    %1762 = vmatpush1.msra.mxu0 0.0
    %1763 = vmatprep.subr.mxu0 0.0
    %1764 = vmatpush1.msra.mxu0 0.0
    %1765 = vmatprep.subr.mxu0 0.0
    %1766 = vmatpush1.msra.mxu0 0.0
    %1767 = vmatprep.subr.mxu0 0.0
    %1768 = vmatpush1.msra.mxu0 0.0
    %1769 = vmatprep.subr.mxu0 0.0
    %1770 = vmatpush1.msra.mxu0 0.0
    %1771 = vmatprep.subr.mxu0 0.0
    %1772 = vmatpush1.msra.mxu0 0.0
    %1773 = vmatprep.subr.mxu0 0.0
    %1774 = vmatpush1.msra.mxu0 0.0
    %1775 = vmatprep.subr.mxu0 0.0
    %1776 = vmatpush1.msra.mxu0 0.0
    %1777 = vmatprep.subr.mxu0 0.0
    %1778 = vmatpush1.msra.mxu0 0.0
    %1779 = vmatprep.subr.mxu0 0.0
    %1780 = vmatpush1.msra.mxu0 0.0
    %1781 = vmatprep.subr.mxu0 0.0
    %1782 = vmatpush1.msra.mxu0 0.0
    %1783 = vmatprep.subr.mxu0 0.0
    %1784 = vmatpush1.msra.mxu0 0.0
    %1785 = vmatprep.subr.mxu0 0.0
    %1786 = vmatpush1.msra.mxu0 0.0
    %1787 = vmatprep.subr.mxu0 0.0
    %1788 = vmatpush1.msra.mxu0 0.0
    %1789 = vmatprep.subr.mxu0 0.0
    %1790 = vmatpush1.msra.mxu0 0.0
    %1791 = vmatprep.mubr.f32.mxu0 0.0
    %1792 = vmatmul.mubr.f32.gmra.mrb[0].mxu0 %v1725
    %v1793 = vpop.f32.mrb[0].mxu0
    %v1794 = vadd.f32 %v198, %v1793
    %v1795 = vpop.f32.mrb[0].mxu0
    %1796 = vdwg.mxu0
    %vm1797 = vcmask 8192
    %v1798 = vsel %vm1797, %v1794, -inf
    %1799 = vmax.xlane.f32.xlu0 %v1798
    %v1800 = vpop.xlane.xlu0 %1799
    %v1801 = vsub.f32 %v1794, %v1800
    %v1802 = vmul.f32 %v1801, 1.442695
    %v1803 = vpow.pop %v1802
    %v1804 = vsel %vm1797, %v1803, 0.0
    %1805 = vadd.xlane.f32.xlu0 %v1804
    %v1806 = vpop.xlane.xlu0 %1805
    %v1807 = vlog2.pop %v1806
    %v1808 = vmul.f32 %v1807, 0.6931472
    %v1809 = vadd.f32 %v1808, %v1800
    %v1810 = vsub.f32 %v1794, %v1809
    %1811 = vst.msk [vmem:[#allocation19] sm:$0x1] %vm1797, %v1810
    // Predicated region
    $region82: #{tpu_custom_call.1} parent=1 // pred_check
      _
    $region83: #{tpu_custom_call.1} parent=1 // pred_check_branch
      %1813 = sbr.rel (0) target = $region85
    $region84: #{tpu_custom_call.1} parent=1 // pred_region
      %s1815 = ssub.s32 16, 16
      %1816 = vsyncadd [#allocation4], %s1815
      %s1818 = sshll.u32 [#allocation19], 4
      %s1819 = int_to_ptr.vmem [resolvable:$true] %s1818
      %1821 = dma.vmem_to_hbm [thread:$0]  %s1819, 16, %s10, [#allocation4]
    $region85: #{tpu_custom_call.1} parent=1 // pred_fallthru
      _
    // Predicated region
    $region86: #{tpu_custom_call.1} parent=1 // pred_check
      _
    $region87: #{tpu_custom_call.1} parent=1 // pred_check_branch
      %1823 = sbr.rel (0) target = $region89
    $region88: #{tpu_custom_call.1} parent=1 // pred_region
      %1824 = dma.done [#allocation4], 16
    $region89: #{tpu_custom_call.1} parent=1 // pred_fallthru
      _
    %1825 = vsyncpa [#allocation3], 1
    %1826 = vsyncpa [#allocation6], 1
    %1827 = vsyncpa [#allocation9], 1
    %1828 = vsyncpa [#allocation12], 1
    %1829 = vsyncpa [#allocation15], 1
    %1830 = vsyncpa [#allocation18], 1
    %1831 = vsyncpa [#allocation4], 1

</llo_original>
